<compile_context>
chip_gen: v7x
topology: tpu7x:2x2x1
jax: 0.10.0
libtpu: 0.0.40
codegen_flags: <defaults>
</compile_context>

<pallas_src>
import functools

import jax
import jax.numpy as jnp
from jax.experimental import pallas as pl
from jax.experimental.pallas import tpu as pltpu


def _gated_conv_kernel(xa_ref, xh0_ref, xh1_ref, w_ref, b_ref,
                       o_ref, *stats_refs, approx_sigmoid):
    # xa_ref  : (TH, W+2, Cin)        main row block of the zero-padded input
    # xh0_ref : (1,  W+2, Cin)        halo row (padded row r*TH + TH)
    # xh1_ref : (1,  W+2, Cin)        halo row (padded row r*TH + TH + 1)
    # w_ref   : (3, 3*Cin, 2*Cout)    (kh, kw*Cin, [w_feat | w_mask])
    # b_ref   : (1, 2*Cout)           concat([b_feat, b_mask]) in f32
    # o_ref   : (TH*W, Cout)          gated activation  ELU(f) * sigmoid(m)
    # stats   : (2, Cout)             per-block [sum(y); sum(y*y)] for BN
    TH, Wp2, Cin = xa_ref.shape
    W = Wp2 - 2
    Cout = o_ref.shape[-1]

    # (TH+2, W+2, Cin) window; concatenation is along the untiled leading dim.
    x = jnp.concatenate([xa_ref[...], xh0_ref[...], xh1_ref[...]], axis=0)

    # Merge the 3 kw taps into the matmul K dimension: one lane-concat of the
    # three column-shifted views, then a (layout-preserving when W % 8 == 0)
    # reshape.  The kh taps below are sublane-aligned row slices of this.
    xw = jnp.concatenate(
        [x[:, 0:W, :], x[:, 1:W + 1, :], x[:, 2:W + 2, :]], axis=-1)
    xw = xw.reshape((TH + 2) * W, 3 * Cin)

    acc = jnp.zeros((TH * W, 2 * Cout), jnp.float32)
    for kh in range(3):
        patch = xw[kh * W:kh * W + TH * W, :]
        # feat + mask convolutions fused into a single MXU matmul per kh.
        acc = acc + jnp.dot(patch, w_ref[kh],
                            preferred_element_type=jnp.float32)

    bias = b_ref[...].astype(jnp.float32)                   # (1, 2*Cout)
    feat = acc[:, :Cout] + bias[:, :Cout]
    mask = acc[:, Cout:] + bias[:, Cout:]
    # ELU(alpha=1); clamp the exp argument so the unused branch cannot overflow.
    feat = jnp.where(feat > 0, feat, jnp.exp(jnp.minimum(feat, 0.0)) - 1.0)
    # Sigmoid via the EUP reciprocal (approx only on the bf16 fast path, to
    # keep the strict f32 tolerance on the default path).
    gate = pl.reciprocal(1.0 + jnp.exp(-mask), approx=approx_sigmoid)
    y = feat * gate                                         # (TH*W, Cout) f32

    o_ref[...] = y.astype(o_ref.dtype)
    if stats_refs:
        # Partial BatchNorm statistics for this (n, r) block.
        stats_ref, = stats_refs
        psum = jnp.sum(y, axis=0, keepdims=True)
        psumsq = jnp.sum(y * y, axis=0, keepdims=True)
        stats_ref[...] = jnp.concatenate([psum, psumsq], axis=0)


def _pick_tile_h(H, W, Cin, Cout, compute_dtype, n_batch):
    """Largest divisor of H whose per-step working set fits a VMEM budget."""
    item = jnp.dtype(compute_dtype).itemsize
    per_row = ((W + 2) * Cin * item * 3        # dbl-buffered input + window
               + W * 3 * Cin * item            # K-merged lane-concat patch
               + W * (2 * Cout) * 4            # f32 accumulator
               + 2 * W * Cout * 4)             # dbl-buffered output block
    budget = 8 << 20
    best = 1
    for d in range(1, H + 1):
        if H % d != 0 or d * per_row > budget:
            continue
        if n_batch == 1 and d == H and H > 1:
            continue   # keep >= 2 row blocks so both v7x TensorCores get work
        best = d
    return best


def gated_conv2d_pallas(x_nhwc, w_feat, b_feat, w_mask, b_mask, *,
                        tile_h=None, compute_dtype=jnp.float32,
                        with_stats=True):
    """3x3 'same' gated conv. Returns (y (N,H,W,Cout), bn partial stats|None)."""
    N, H, W, Cin = x_nhwc.shape
    Cout = w_feat.shape[-1]

    # Fuse feature + mask convolutions along Cout and the kw taps along the
    # contraction dim: (kh, kw, Cin, 2*Cout) -> (kh, kw*Cin, 2*Cout).
    w_cat = jnp.concatenate([w_feat, w_mask], axis=-1)        # (3,3,Cin,2Cout)
    w_cat = w_cat.reshape(3, 3 * Cin, 2 * Cout).astype(compute_dtype)
    b_cat = jnp.concatenate([b_feat, b_mask], axis=-1)
    b_cat = b_cat.reshape(1, 2 * Cout).astype(jnp.float32)

    TH = tile_h if tile_h is not None else _pick_tile_h(
        H, W, Cin, Cout, compute_dtype, N)
    if H % TH != 0:
        raise ValueError(f"tile_h={TH} must divide H={H}")
    nR = H // TH

    # TODO(synk): the zero 'same' pad is still one extra HBM round trip over
    # the input; removing it needs manual-DMA halo handling (pl.ANY +
    # make_async_copy + boundary masking), kept out here to stay on the robust
    # auto-pipelined BlockSpec path.
    xp = jnp.pad(x_nhwc.astype(compute_dtype),
                 ((0, 0), (1, 1), (1, 1), (0, 0)))

    cost = pl.CostEstimate(
        flops=2 * N * H * W * 9 * Cin * (2 * Cout),
        transcendentals=2 * N * H * W * Cout,
        bytes_accessed=(xp.size * xp.dtype.itemsize
                        + w_cat.size * w_cat.dtype.itemsize
                        + b_cat.size * 4
                        + N * H * W * Cout * x_nhwc.dtype.itemsize
                        + (N * nR * 2 * Cout * 4 if with_stats else 0)),
    )

    kernel = functools.partial(
        _gated_conv_kernel,
        approx_sigmoid=(jnp.dtype(compute_dtype) == jnp.dtype(jnp.bfloat16)))

    # NOTE: with Cout < 128 the output stores are lane-masked; a lane-dense
    # (TH, W*Cout) out block would need an in-kernel minor-dim relayout that
    # does not pay off (the HBM writeback of the (TH*W, Cout) block is already
    # fully contiguous), so the natural matmul layout is kept and reshaped in
    # the wrapper (metadata-only in XLA).
    y_shape = jax.ShapeDtypeStruct((N, H * W, Cout), x_nhwc.dtype)
    y_spec = pl.BlockSpec((None, TH * W, Cout), lambda n, r: (n, r, 0))
    if with_stats:
        out_shape = (y_shape,
                     jax.ShapeDtypeStruct((N, nR, 2, Cout), jnp.float32))
        out_specs = [y_spec,
                     pl.BlockSpec((None, None, 2, Cout),
                                  lambda n, r: (n, r, 0, 0))]
    else:
        out_shape = (y_shape,)
        out_specs = [y_spec]

    outs = pl.pallas_call(
        kernel,
        out_shape=out_shape,
        grid_spec=pltpu.PrefetchScalarGridSpec(
            num_scalar_prefetch=0,
            grid=(N, nR),
            in_specs=[
                # main TH-row block of the padded input
                pl.BlockSpec((None, TH, W + 2, Cin),
                             lambda n, r: (n, r, 0, 0)),
                # two 1-row halo blocks (padded rows r*TH+TH and r*TH+TH+1)
                pl.BlockSpec((None, 1, W + 2, Cin),
                             lambda n, r: (n, (r + 1) * TH, 0, 0)),
                pl.BlockSpec((None, 1, W + 2, Cin),
                             lambda n, r: (n, (r + 1) * TH + 1, 0, 0)),
                pl.BlockSpec((3, 3 * Cin, 2 * Cout),
                             lambda n, r: (0, 0, 0)),
                pl.BlockSpec((1, 2 * Cout), lambda n, r: (0, 0)),
            ],
            out_specs=out_specs,
        ),
        compiler_params=pltpu.CompilerParams(
            dimension_semantics=("parallel", "parallel"),
            vmem_limit_bytes=64 * 1024 * 1024,
        ),
        cost_estimate=cost,
    )(xp, xp, xp, w_cat, b_cat)

    if with_stats:
        y_flat, stats = outs
    else:
        y_flat, = outs
        stats = None
    return y_flat.reshape(N, H, W, Cout), stats


def unet_conv_gated_forward(x_nchw, params, norm_layer='bn', *,
                            tile_h=None, compute_dtype=jnp.float32):
    """Forward pass of UNetConvGated. Input/output are NCHW, like PyTorch."""
    N, _, H, W = x_nchw.shape
    x = jnp.transpose(x_nchw, (0, 2, 3, 1))                  # NCHW -> NHWC
    y, stats = gated_conv2d_pallas(
        x, params['w_feat'], params['b_feat'],
        params['w_mask'], params['b_mask'],
        tile_h=tile_h, compute_dtype=compute_dtype,
        with_stats=(norm_layer == 'bn'))

    if norm_layer == 'bn':
        # Finalize BatchNorm2d (training-mode batch stats, biased variance,
        # eps=1e-5) from the kernel's per-block partial sums, then apply as a
        # single fused elementwise pass in NHWC before the output transpose.
        # TODO(synk): the PyTorch module also updates BN running-mean/var
        # buffers as a training side effect; not modeled here (forward output
        # is identical).
        count = N * H * W
        ssum = jnp.sum(stats[:, :, 0, :], axis=(0, 1))
        ssq = jnp.sum(stats[:, :, 1, :], axis=(0, 1))
        mean = ssum / count
        var = jnp.maximum(ssq / count - mean * mean, 0.0)
        scale = params['bn_gamma'] * jax.lax.rsqrt(var + 1e-5)
        shift = params['bn_beta'] - mean * scale
        y = y * scale + shift
    return jnp.transpose(y, (0, 3, 1, 2))                    # NHWC -> NCHW


def init_params(key, in_size, out_size):
    """Deterministic synthetic init (PyTorch Conv2d-style uniform bounds)."""
    k1, k2, k3, k4 = jax.random.split(key, 4)
    fan_in = in_size * 3 * 3
    bound = 1.0 / (fan_in ** 0.5)
    return dict(
        w_feat=jax.random.uniform(k1, (3, 3, in_size, out_size),
                                  jnp.float32, -bound, bound),
        b_feat=jax.random.uniform(k2, (out_size,), jnp.float32, -bound, bound),
        w_mask=jax.random.uniform(k3, (3, 3, in_size, out_size),
                                  jnp.float32, -bound, bound),
        b_mask=jax.random.uniform(k4, (out_size,), jnp.float32, -bound, bound),
        bn_gamma=jnp.ones((out_size,), jnp.float32),   # PyTorch BN init
        bn_beta=jnp.zeros((out_size,), jnp.float32),
    )


def _reference(x_nchw, params, norm_layer='bn'):
    """Pure-JAX reference of the same forward (for correctness check)."""
    x = jnp.transpose(x_nchw, (0, 2, 3, 1))

    def conv(w, b):
        y = jax.lax.conv_general_dilated(
            x, w, window_strides=(1, 1), padding='SAME',
            dimension_numbers=('NHWC', 'HWIO', 'NHWC'),
            precision=jax.lax.Precision.HIGHEST)
        return y + b.reshape(1, 1, 1, -1)

    f = conv(params['w_feat'], params['b_feat'])
    m = conv(params['w_mask'], params['b_mask'])
    f = jnp.where(f > 0, f, jnp.expm1(f))
    y = f * jax.nn.sigmoid(m)
    y = jnp.transpose(y, (0, 3, 1, 2))
    if norm_layer == 'bn':
        mean = jnp.mean(y, axis=(0, 2, 3), keepdims=True)
        var = jnp.var(y, axis=(0, 2, 3), keepdims=True)
        y = (y - mean) / jnp.sqrt(var + 1e-5)
        y = (y * params['bn_gamma'].reshape(1, -1, 1, 1)
             + params['bn_beta'].reshape(1, -1, 1, 1))
    return y


if __name__ == "__main__":
    key = jax.random.PRNGKey(0)
    k_x, k_p = jax.random.split(key)

    N, Cin, H, W = 2, 4, 16, 16
    Cout = 8

    x = jax.random.normal(k_x, (N, Cin, H, W), jnp.float32)
    params = init_params(k_p, Cin, Cout)

    # 1) f32 path, row-tiled (tile_h=8 -> 2 row blocks / image: halo exercised).
    y = unet_conv_gated_forward(x, params, norm_layer='bn', tile_h=8)
    jax.block_until_ready(y)
    y_ref = _reference(x, params, norm_layer='bn')
    assert y.shape == (N, Cout, H, W)
    assert jnp.allclose(y, y_ref, atol=1e-4, rtol=1e-4), "bn/f32 mismatch"

    # 2) auto tile (single row block per image), no normalization, no stats.
    y2 = unet_conv_gated_forward(x, params, norm_layer='none')
    jax.block_until_ready(y2)
    y2_ref = _reference(x, params, norm_layer='none')
    assert jnp.allclose(y2, y2_ref, atol=1e-4, rtol=1e-4), "none/f32 mismatch"

    # 3) bf16 MXU fast path (f32 accumulation / epilogue); looser tolerance
    #    vs the strict f32 reference.
    y3 = unet_conv_gated_forward(x, params, norm_layer='bn', tile_h=8,
                                 compute_dtype=jnp.bfloat16)
    jax.block_until_ready(y3)
    assert jnp.allclose(y3, y_ref, atol=5e-2, rtol=5e-2), "bn/bf16 mismatch"

    print("KERNEL_OK")
</pallas_src>

<mosaic_0001>
module attributes {stable_mosaic.version = 11 : i64} {
  func.func @_gated_conv_kernel(%arg0: i32, %arg1: i32, %arg2: memref<1x8x18x4xf32, #tpu.memory_space<vmem>>, %arg3: memref<1x1x18x4xf32, #tpu.memory_space<vmem>>, %arg4: memref<1x1x18x4xf32, #tpu.memory_space<vmem>>, %arg5: memref<3x12x16xf32, #tpu.memory_space<vmem>>, %arg6: memref<1x16xf32, #tpu.memory_space<vmem>>, %arg7: memref<1x128x8xf32, #tpu.memory_space<vmem>>, %arg8: memref<1x1x2x8xf32, #tpu.memory_space<vmem>>) attributes {dimension_semantics = [#tpu.dimension_semantics<parallel>, #tpu.dimension_semantics<parallel>], iteration_bounds = array<i64: 2, 2>, scalar_prefetch = 0 : i64, scratch_operands = 0 : i64, tpu.core_type = #tpu.core_type<tc>, window_params = [{transform_indices = @transform_0, window_bounds = array<i64: 1, 8, 18, 4>}, {transform_indices = @transform_1, window_bounds = array<i64: 1, 1, 18, 4>}, {transform_indices = @transform_2, window_bounds = array<i64: 1, 1, 18, 4>}, {pipeline_mode = #tpu.pipeline_mode<synchronous>, transform_indices = @transform_3, window_bounds = array<i64: 3, 12, 16>}, {pipeline_mode = #tpu.pipeline_mode<synchronous>, transform_indices = @transform_4, window_bounds = array<i64: 1, 16>}, {transform_indices = @transform_5, window_bounds = array<i64: 1, 128, 8>}, {transform_indices = @transform_6, window_bounds = array<i64: 1, 1, 2, 8>}]} {
    %c0 = arith.constant 0 : index
    %c0_0 = arith.constant 0 : index
    %c0_1 = arith.constant 0 : index
    %c0_2 = arith.constant 0 : index
    %0 = vector.load %arg2[%c0, %c0_0, %c0_1, %c0_2] : memref<1x8x18x4xf32, #tpu.memory_space<vmem>>, vector<1x8x18x4xf32>
    %1 = vector.shape_cast %0 : vector<1x8x18x4xf32> to vector<8x18x4xf32>
    %c0_3 = arith.constant 0 : index
    %c0_4 = arith.constant 0 : index
    %c0_5 = arith.constant 0 : index
    %c0_6 = arith.constant 0 : index
    %2 = vector.load %arg3[%c0_3, %c0_4, %c0_5, %c0_6] : memref<1x1x18x4xf32, #tpu.memory_space<vmem>>, vector<1x1x18x4xf32>
    %3 = vector.shape_cast %2 : vector<1x1x18x4xf32> to vector<1x18x4xf32>
    %c0_7 = arith.constant 0 : index
    %c0_8 = arith.constant 0 : index
    %c0_9 = arith.constant 0 : index
    %c0_10 = arith.constant 0 : index
    %4 = vector.load %arg4[%c0_7, %c0_8, %c0_9, %c0_10] : memref<1x1x18x4xf32, #tpu.memory_space<vmem>>, vector<1x1x18x4xf32>
    %5 = vector.shape_cast %4 : vector<1x1x18x4xf32> to vector<1x18x4xf32>
    %6 = tpu.concatenate %1, %3, %5 in 0 : vector<8x18x4xf32>, vector<1x18x4xf32>, vector<1x18x4xf32> -> vector<10x18x4xf32>
    %7 = vector.extract_strided_slice %6 {offsets = [0, 0, 0], sizes = [10, 16, 4], strides = [1, 1, 1]} : vector<10x18x4xf32> to vector<10x16x4xf32>
    %8 = vector.extract_strided_slice %6 {offsets = [0, 1, 0], sizes = [10, 16, 4], strides = [1, 1, 1]} : vector<10x18x4xf32> to vector<10x16x4xf32>
    %9 = vector.extract_strided_slice %6 {offsets = [0, 2, 0], sizes = [10, 16, 4], strides = [1, 1, 1]} : vector<10x18x4xf32> to vector<10x16x4xf32>
    %10 = tpu.concatenate %7, %8, %9 in 2 : vector<10x16x4xf32>, vector<10x16x4xf32>, vector<10x16x4xf32> -> vector<10x16x12xf32>
    %11 = vector.shape_cast %10 : vector<10x16x12xf32> to vector<160x12xf32>
    %cst = arith.constant 0.000000e+00 : f32
    %12 = vector.broadcast %cst : f32 to vector<128x16xf32>
    %13 = vector.extract_strided_slice %11 {offsets = [0, 0], sizes = [128, 12], strides = [1, 1]} : vector<160x12xf32> to vector<128x12xf32>
    %c0_11 = arith.constant 0 : index
    %c0_12 = arith.constant 0 : index
    %c0_13 = arith.constant 0 : index
    %14 = vector.load %arg5[%c0_11, %c0_12, %c0_13] : memref<3x12x16xf32, #tpu.memory_space<vmem>>, vector<1x12x16xf32>
    %15 = vector.shape_cast %14 : vector<1x12x16xf32> to vector<12x16xf32>
    %cst_14 = arith.constant dense<0.000000e+00> : vector<128x16xf32>
    %16 = tpu.matmul %13, %15, %cst_14 {dimension_numbers = #tpu.dot_dimension_numbers<[1], [0], [0], [1], [0, 0, 1, 1], [], []>} : vector<128x12xf32>, vector<12x16xf32>, vector<128x16xf32> -> vector<128x16xf32>
    %17 = arith.addf %12, %16 : vector<128x16xf32>
    %18 = vector.extract_strided_slice %11 {offsets = [16, 0], sizes = [128, 12], strides = [1, 1]} : vector<160x12xf32> to vector<128x12xf32>
    %c1 = arith.constant 1 : index
    %c0_15 = arith.constant 0 : index
    %c0_16 = arith.constant 0 : index
    %19 = vector.load %arg5[%c1, %c0_15, %c0_16] : memref<3x12x16xf32, #tpu.memory_space<vmem>>, vector<1x12x16xf32>
    %20 = vector.shape_cast %19 : vector<1x12x16xf32> to vector<12x16xf32>
    %cst_17 = arith.constant dense<0.000000e+00> : vector<128x16xf32>
    %21 = tpu.matmul %18, %20, %cst_17 {dimension_numbers = #tpu.dot_dimension_numbers<[1], [0], [0], [1], [0, 0, 1, 1], [], []>} : vector<128x12xf32>, vector<12x16xf32>, vector<128x16xf32> -> vector<128x16xf32>
    %22 = arith.addf %17, %21 : vector<128x16xf32>
    %23 = vector.extract_strided_slice %11 {offsets = [32, 0], sizes = [128, 12], strides = [1, 1]} : vector<160x12xf32> to vector<128x12xf32>
    %c2 = arith.constant 2 : index
    %c0_18 = arith.constant 0 : index
    %c0_19 = arith.constant 0 : index
    %24 = vector.load %arg5[%c2, %c0_18, %c0_19] : memref<3x12x16xf32, #tpu.memory_space<vmem>>, vector<1x12x16xf32>
    %25 = vector.shape_cast %24 : vector<1x12x16xf32> to vector<12x16xf32>
    %cst_20 = arith.constant dense<0.000000e+00> : vector<128x16xf32>
    %26 = tpu.matmul %23, %25, %cst_20 {dimension_numbers = #tpu.dot_dimension_numbers<[1], [0], [0], [1], [0, 0, 1, 1], [], []>} : vector<128x12xf32>, vector<12x16xf32>, vector<128x16xf32> -> vector<128x16xf32>
    %27 = arith.addf %22, %26 : vector<128x16xf32>
    %c0_21 = arith.constant 0 : index
    %c0_22 = arith.constant 0 : index
    %28 = vector.load %arg6[%c0_21, %c0_22] : memref<1x16xf32, #tpu.memory_space<vmem>>, vector<1x16xf32>
    %29 = vector.extract_strided_slice %27 {offsets = [0, 0], sizes = [128, 8], strides = [1, 1]} : vector<128x16xf32> to vector<128x8xf32>
    %30 = vector.extract_strided_slice %28 {offsets = [0, 0], sizes = [1, 8], strides = [1, 1]} : vector<1x16xf32> to vector<1x8xf32>
    %31 = vector.broadcast %30 : vector<1x8xf32> to vector<128x8xf32>
    %32 = arith.addf %29, %31 : vector<128x8xf32>
    %33 = vector.extract_strided_slice %27 {offsets = [0, 8], sizes = [128, 8], strides = [1, 1]} : vector<128x16xf32> to vector<128x8xf32>
    %34 = vector.extract_strided_slice %28 {offsets = [0, 8], sizes = [1, 8], strides = [1, 1]} : vector<1x16xf32> to vector<1x8xf32>
    %35 = vector.broadcast %34 : vector<1x8xf32> to vector<128x8xf32>
    %36 = arith.addf %33, %35 : vector<128x8xf32>
    %cst_23 = arith.constant 0.000000e+00 : f32
    %37 = vector.broadcast %cst_23 : f32 to vector<128x8xf32>
    %38 = arith.cmpf ogt, %32, %37 : vector<128x8xf32>
    %cst_24 = arith.constant 0.000000e+00 : f32
    %39 = vector.broadcast %cst_24 : f32 to vector<128x8xf32>
    %40 = arith.minimumf %32, %39 : vector<128x8xf32>
    %41 = math.exp %40 : vector<128x8xf32>
    %cst_25 = arith.constant 1.000000e+00 : f32
    %42 = vector.broadcast %cst_25 : f32 to vector<128x8xf32>
    %43 = arith.subf %41, %42 : vector<128x8xf32>
    %44 = arith.select %38, %32, %43 : vector<128x8xi1>, vector<128x8xf32>
    %cst_26 = arith.constant 0.000000e+00 : f32
    %45 = vector.broadcast %cst_26 : f32 to vector<128x8xf32>
    %46 = arith.subf %45, %36 : vector<128x8xf32>
    %47 = math.exp %46 : vector<128x8xf32>
    %cst_27 = arith.constant 1.000000e+00 : f32
    %48 = vector.broadcast %cst_27 : f32 to vector<128x8xf32>
    %49 = arith.addf %48, %47 : vector<128x8xf32>
    %50 = tpu.reciprocal %49 : vector<128x8xf32> -> vector<128x8xf32>
    %51 = arith.mulf %44, %50 : vector<128x8xf32>
    %c0_28 = arith.constant 0 : index
    %c0_29 = arith.constant 0 : index
    %c0_30 = arith.constant 0 : index
    %52 = vector.load %arg7[%c0_28, %c0_29, %c0_30] : memref<1x128x8xf32, #tpu.memory_space<vmem>>, vector<1x128x8xf32>
    %53 = vector.shape_cast %52 : vector<1x128x8xf32> to vector<128x8xf32>
    %54 = vector.shape_cast %51 : vector<128x8xf32> to vector<1x128x8xf32>
    tpu.vector_store %arg7[%c0_28, %c0_29, %c0_30], %54 {strides = array<i32>} : memref<1x128x8xf32, #tpu.memory_space<vmem>>, vector<1x128x8xf32>,
    %cst_31 = arith.constant dense<0.000000e+00> : vector<8xf32>
    %55 = vector.multi_reduction <add>, %51, %cst_31 [0] : vector<128x8xf32> to vector<8xf32>
    %56 = vector.shape_cast %55 : vector<8xf32> to vector<1x8xf32>
    %57 = arith.mulf %51, %51 : vector<128x8xf32>
    %cst_32 = arith.constant dense<0.000000e+00> : vector<8xf32>
    %58 = vector.multi_reduction <add>, %57, %cst_32 [0] : vector<128x8xf32> to vector<8xf32>
    %59 = vector.shape_cast %58 : vector<8xf32> to vector<1x8xf32>
    %60 = tpu.concatenate %56, %59 in 0 : vector<1x8xf32>, vector<1x8xf32> -> vector<2x8xf32>
    %c0_33 = arith.constant 0 : index
    %c0_34 = arith.constant 0 : index
    %c0_35 = arith.constant 0 : index
    %c0_36 = arith.constant 0 : index
    %61 = vector.load %arg8[%c0_33, %c0_34, %c0_35, %c0_36] : memref<1x1x2x8xf32, #tpu.memory_space<vmem>>, vector<1x1x2x8xf32>
    %62 = vector.shape_cast %61 : vector<1x1x2x8xf32> to vector<2x8xf32>
    %63 = vector.shape_cast %60 : vector<2x8xf32> to vector<1x1x2x8xf32>
    tpu.vector_store %arg8[%c0_33, %c0_34, %c0_35, %c0_36], %63 {strides = array<i32>} : memref<1x1x2x8xf32, #tpu.memory_space<vmem>>, vector<1x1x2x8xf32>,
    return
  }
  func.func @transform_0(%arg0: i32, %arg1: i32) -> (i32, i32, i32, i32) {
    %c0_i32 = arith.constant 0 : i32
    %c0_i32_0 = arith.constant 0 : i32
    %c0_i32_1 = arith.constant 0 : i32
    return %arg0, %arg1, %c0_i32, %c0_i32_0 : i32, i32, i32, i32
  }
  func.func @transform_1(%arg0: i32, %arg1: i32) -> (i32, i32, i32, i32) {
    %c1_i32 = arith.constant 1 : i32
    %0 = arith.addi %arg1, %c1_i32 : i32
    %c8_i32 = arith.constant 8 : i32
    %1 = arith.muli %0, %c8_i32 : i32
    %c0_i32 = arith.constant 0 : i32
    %c0_i32_0 = arith.constant 0 : i32
    %c0_i32_1 = arith.constant 0 : i32
    return %arg0, %1, %c0_i32, %c0_i32_0 : i32, i32, i32, i32
  }
  func.func @transform_2(%arg0: i32, %arg1: i32) -> (i32, i32, i32, i32) {
    %c1_i32 = arith.constant 1 : i32
    %0 = arith.addi %arg1, %c1_i32 : i32
    %c8_i32 = arith.constant 8 : i32
    %1 = arith.muli %0, %c8_i32 : i32
    %c1_i32_0 = arith.constant 1 : i32
    %2 = arith.addi %1, %c1_i32_0 : i32
    %c0_i32 = arith.constant 0 : i32
    %c0_i32_1 = arith.constant 0 : i32
    %c0_i32_2 = arith.constant 0 : i32
    return %arg0, %2, %c0_i32, %c0_i32_1 : i32, i32, i32, i32
  }
  func.func @transform_3(%arg0: i32, %arg1: i32) -> (i32, i32, i32) {
    %c0_i32 = arith.constant 0 : i32
    %c0_i32_0 = arith.constant 0 : i32
    %c0_i32_1 = arith.constant 0 : i32
    %c0_i32_2 = arith.constant 0 : i32
    return %c0_i32, %c0_i32_0, %c0_i32_1 : i32, i32, i32
  }
  func.func @transform_4(%arg0: i32, %arg1: i32) -> (i32, i32) {
    %c0_i32 = arith.constant 0 : i32
    %c0_i32_0 = arith.constant 0 : i32
    %c0_i32_1 = arith.constant 0 : i32
    return %c0_i32, %c0_i32_0 : i32, i32
  }
  func.func @transform_5(%arg0: i32, %arg1: i32) -> (i32, i32, i32) {
    %c0_i32 = arith.constant 0 : i32
    %c0_i32_0 = arith.constant 0 : i32
    return %arg0, %arg1, %c0_i32 : i32, i32, i32
  }
  func.func @transform_6(%arg0: i32, %arg1: i32) -> (i32, i32, i32, i32) {
    %c0_i32 = arith.constant 0 : i32
    %c0_i32_0 = arith.constant 0 : i32
    %c0_i32_1 = arith.constant 0 : i32
    return %arg0, %arg1, %c0_i32, %c0_i32_0 : i32, i32, i32, i32
  }
}

</mosaic_0001>

<llo_original>
// kernel: tpu_custom_call.1
$region0: #{tpu_custom_call.1}
  #allocation0 [shape = 'u32[]', space=smem, size = 0x4, offset = 0x4, fixed_abs, tag = 'smem constant byte address 0x4 - core index']
  #allocation1 [shape = 'u32[144,128]{1,0:T(1,128)}', space=vmem, size = 0x12000, scoped, tag = 'internal scratch']
  %s0 = inlined_call_operand.hbm [shape: f32[2,18,18,4], index: 0, kind: input, shape index: {}]
  %s1 = inlined_call_operand.hbm [shape: f32[2,18,18,4], index: 1, kind: input, shape index: {}]
  %s2 = inlined_call_operand.hbm [shape: f32[2,18,18,4], index: 2, kind: input, shape index: {}]
  %s3 = inlined_call_operand.hbm [shape: f32[3,12,16], index: 3, kind: input, shape index: {}]
  %s4 = inlined_call_operand.hbm [shape: f32[1,16], index: 4, kind: input, shape index: {}]
  %s5 = inlined_call_operand.hbm [shape: f32[2,256,8], index: 5, kind: output, shape index: {0}]
  %s6 = inlined_call_operand.hbm [shape: f32[2,2,2,8], index: 6, kind: output, shape index: {1}]
  %7 = xla_tuple %s5, %s6
  %s8 = sld [smem:[#allocation0]]
  $region81: #{tpu_custom_call.1} parent=0
    _
  %s10 = ssub.s32 1, %s8
  %s11 = scalar_select 0, %s10, %s8
  $region1: #{tpu_custom_call.1} parent=0
    #allocation2 [shape = 'u8[196608]{0}', space=vmem, size = 0x30000, scoped, tag = 'input window, operand 0']
    #allocation3 [shape = 's32[2]{0}', space=sflag, size = 0x8, scoped, tag = 'scoped memory for tpu_custom_call.1']
    #allocation4 [shape = 's32[2]{0}', space=sflag, size = 0x8, scoped, tag = 'scoped memory for tpu_custom_call.1']
    #allocation5 [shape = 'u8[24576]{0}', space=vmem, size = 0x6000, scoped, tag = 'input window, operand 1']
    #allocation6 [shape = 's32[2]{0}', space=sflag, size = 0x8, scoped, tag = 'scoped memory for tpu_custom_call.1']
    #allocation7 [shape = 'u8[24576]{0}', space=vmem, size = 0x6000, scoped, tag = 'input window, operand 2']
    #allocation8 [shape = 'u8[24576]{0}', space=vmem, size = 0x6000, scoped, tag = 'input window, operand 3, single buffered']
    #allocation9 [shape = 's32[1]{0}', space=sflag, size = 0x4, scoped, tag = 'scoped memory for tpu_custom_call.1']
    #allocation10 [shape = 'u8[512]{0}', space=vmem, size = 0x400, scoped, tag = 'input window, operand 4, single buffered']
    #allocation11 [shape = 'u8[131072]{0}', space=vmem, size = 0x20000, scoped, tag = 'output window, operand 0']
    #allocation12 [shape = 'u8[2048]{0}', space=vmem, size = 0x800, scoped, tag = 'output window, operand 1']
    #allocation13 [shape = 's32[2]{0}', space=sflag, size = 0x8, scoped, tag = 'scoped memory for tpu_custom_call.1']
    %12 = vsyncpa [#allocation3], 0
    %s13 = scalar_lea.sflag [#allocation3], 1
    %14 = vsyncpa %s13, 0
    %15 = vsyncpa [#allocation6], 0
    %s16 = scalar_lea.sflag [#allocation6], 1
    %17 = vsyncpa %s16, 0
    %18 = vsyncpa [#allocation9], 0
    %19 = vsyncpa [#allocation4], 0
    %s20 = scalar_lea.sflag [#allocation4], 1
    %21 = vsyncpa %s20, 0
    %22 = vsyncpa [#allocation13], 0
    %s23 = scalar_lea.sflag [#allocation13], 1
    %24 = vsyncpa %s23, 0
    loop: start=0, step=1, limit=6
    $region2: #{tpu_custom_call.1} parent=1 // loop_pre_header
      _
    $region3: #{tpu_custom_call.1} parent=1 // loop_header
      %s26 = sphi 0, %s30
      %p27 = scmp.ge.s32.totalorder %s26, 6
      %s33 = sphi 0, %s45
      %s34 = sphi 0, %s41
      %s35 = sphi 0, %s33
      %s36 = sphi 0, %s34
      %s37 = sphi 0, %s35
      %s38 = sphi 0, %s36
      %s50 = sphi 0, %s52
      %s53 = sphi 0, %s50
      %s54 = sphi 0, %s53
      %s70 = sphi 0, %s54
      %s82 = sphi 0, %s84
      %s85 = sphi 0, %s82
      %s86 = sphi 0, %s85
      %s102 = sphi 0, %s86
      %s116 = sphi 0, %s118
      %s119 = sphi 0, %s116
      %s120 = sphi 0, %s119
      %s136 = sphi 0, %s120
      %s140 = sphi 0, %s140
      %s142 = sphi 0, %s140
      %s143 = sphi 0, %s142
      %s157 = sphi 0, %s143
      %s161 = sphi 0, %s161
      %s163 = sphi 0, %s161
      %s164 = sphi 0, %s163
      %s178 = sphi 0, %s164
      %s186 = sphi 0, %s188
      %s189 = sphi 0, %s186
      %s190 = sphi 0, %s189
      %s206 = sphi 0, %s190
      %s214 = sphi 0, %s216
      %s217 = sphi 0, %s214
      %s218 = sphi 0, %s217
      %s234 = sphi 0, %s218
    $region4: #{tpu_custom_call.1} parent=1 // loop_header_branch
      %29 = sbr.rel (%p27) target = $region8
    $region5: #{tpu_custom_call.1} parent=1 // loop_body
      %s31 = ssub.s32 %s26, 1
      %s32 = ssub.s32 %s26, 2
      %s39 = sadd.s32 1, %s34
      %p40 = scmp.ge.s32.totalorder %s39, 2
      %s41 = scalar_select %p40, 0, %s39
      %s42 = sadd.s32 1, %s33
      %s43 = scalar_select %p40, %s42, %s33
      %p44 = scmp.ge.s32.totalorder %s43, 2
      %s45 = scalar_select %p44, 0, %s43
      %s46 = ssub.s32 %s33, %s45
      %s47 = ssub.s32 %s34, %s41
      %s48 = sor.u32 %s46, %s47
      %p49 = scmp.eq.s32.totalorder %s48, 0
      %s51 = sadd.s32 %s50, 1
      %s52 = scalar_select %p49, %s50, %s51
      %p55 = pneg %p49
      %p56 = scmp.eq.s32.totalorder %s26, 3
      %p57 = por %p55, %p56
      %p58 = scmp.ne.s32.totalorder %s50, %s53
      %p59 = scmp.eq.s32.totalorder %s26, 0
      %p60 = por %p58, %p59
      %p61 = scmp.ne.s32.totalorder %s50, %s53
      %p62 = scmp.eq.s32.totalorder %s31, 3
      %p63 = por %p61, %p62
      %p64 = scmp.ne.s32.totalorder %s53, %s54
      %p65 = scmp.eq.s32.totalorder %s31, 0
      %p66 = por %p64, %p65
      %p67 = scmp.ne.s32.totalorder %s53, %s54
      %p68 = scmp.eq.s32.totalorder %s32, 3
      %p69 = por %p67, %p68
      %p71 = scmp.ne.s32.totalorder %s54, %s70
      %p72 = scmp.eq.s32.totalorder %s32, 0
      %p73 = por %p71, %p72
      %s74 = sadd.s32 %s34, 1
      %s75 = smul.u32 %s74, 8
      %s76 = sadd.s32 %s41, 1
      %s77 = smul.u32 %s76, 8
      %s78 = ssub.s32 %s33, %s45
      %s79 = ssub.s32 %s75, %s77
      %s80 = sor.u32 %s78, %s79
      %p81 = scmp.eq.s32.totalorder %s80, 0
      %s83 = sadd.s32 %s82, 1
      %s84 = scalar_select %p81, %s82, %s83
      %p87 = pneg %p81
      %p88 = scmp.eq.s32.totalorder %s26, 3
      %p89 = por %p87, %p88
      %p90 = scmp.ne.s32.totalorder %s82, %s85
      %p91 = scmp.eq.s32.totalorder %s26, 0
      %p92 = por %p90, %p91
      %p93 = scmp.ne.s32.totalorder %s82, %s85
      %p94 = scmp.eq.s32.totalorder %s31, 3
      %p95 = por %p93, %p94
      %p96 = scmp.ne.s32.totalorder %s85, %s86
      %p97 = scmp.eq.s32.totalorder %s31, 0
      %p98 = por %p96, %p97
      %p99 = scmp.ne.s32.totalorder %s85, %s86
      %p100 = scmp.eq.s32.totalorder %s32, 3
      %p101 = por %p99, %p100
      %p103 = scmp.ne.s32.totalorder %s86, %s102
      %p104 = scmp.eq.s32.totalorder %s32, 0
      %p105 = por %p103, %p104
      %s106 = sadd.s32 %s34, 1
      %s107 = smul.u32 %s106, 8
      %s108 = sadd.s32 %s107, 1
      %s109 = sadd.s32 %s41, 1
      %s110 = smul.u32 %s109, 8
      %s111 = sadd.s32 %s110, 1
      %s112 = ssub.s32 %s33, %s45
      %s113 = ssub.s32 %s108, %s111
      %s114 = sor.u32 %s112, %s113
      %p115 = scmp.eq.s32.totalorder %s114, 0
      %s117 = sadd.s32 %s116, 1
      %s118 = scalar_select %p115, %s116, %s117
      %p121 = pneg %p115
      %p122 = scmp.eq.s32.totalorder %s26, 3
      %p123 = por %p121, %p122
      %p124 = scmp.ne.s32.totalorder %s116, %s119
      %p125 = scmp.eq.s32.totalorder %s26, 0
      %p126 = por %p124, %p125
      %p127 = scmp.ne.s32.totalorder %s116, %s119
      %p128 = scmp.eq.s32.totalorder %s31, 3
      %p129 = por %p127, %p128
      %p130 = scmp.ne.s32.totalorder %s119, %s120
      %p131 = scmp.eq.s32.totalorder %s31, 0
      %p132 = por %p130, %p131
      %p133 = scmp.ne.s32.totalorder %s119, %s120
      %p134 = scmp.eq.s32.totalorder %s32, 3
      %p135 = por %p133, %p134
      %p137 = scmp.ne.s32.totalorder %s120, %s136
      %p138 = scmp.eq.s32.totalorder %s32, 0
      %p139 = por %p137, %p138
      %s141 = sadd.s32 %s140, 1
      %p144 = scmp.eq.s32.totalorder %s26, 3
      %p145 = scmp.ne.s32.totalorder %s140, %s142
      %p146 = scmp.eq.s32.totalorder %s26, 0
      %p147 = por %p145, %p146
      %p148 = scmp.ne.s32.totalorder %s140, %s142
      %p149 = scmp.eq.s32.totalorder %s31, 3
      %p150 = por %p148, %p149
      %p151 = scmp.ne.s32.totalorder %s142, %s143
      %p152 = scmp.eq.s32.totalorder %s31, 0
      %p153 = por %p151, %p152
      %p154 = scmp.ne.s32.totalorder %s142, %s143
      %p155 = scmp.eq.s32.totalorder %s32, 3
      %p156 = por %p154, %p155
      %p158 = scmp.ne.s32.totalorder %s143, %s157
      %p159 = scmp.eq.s32.totalorder %s32, 0
      %p160 = por %p158, %p159
      %s162 = sadd.s32 %s161, 1
      %p165 = scmp.eq.s32.totalorder %s26, 3
      %p166 = scmp.ne.s32.totalorder %s161, %s163
      %p167 = scmp.eq.s32.totalorder %s26, 0
      %p168 = por %p166, %p167
      %p169 = scmp.ne.s32.totalorder %s161, %s163
      %p170 = scmp.eq.s32.totalorder %s31, 3
      %p171 = por %p169, %p170
      %p172 = scmp.ne.s32.totalorder %s163, %s164
      %p173 = scmp.eq.s32.totalorder %s31, 0
      %p174 = por %p172, %p173
      %p175 = scmp.ne.s32.totalorder %s163, %s164
      %p176 = scmp.eq.s32.totalorder %s32, 3
      %p177 = por %p175, %p176
      %p179 = scmp.ne.s32.totalorder %s164, %s178
      %p180 = scmp.eq.s32.totalorder %s32, 0
      %p181 = por %p179, %p180
      %s182 = ssub.s32 %s33, %s45
      %s183 = ssub.s32 %s34, %s41
      %s184 = sor.u32 %s182, %s183
      %p185 = scmp.eq.s32.totalorder %s184, 0
      %s187 = sadd.s32 %s186, 1
      %s188 = scalar_select %p185, %s186, %s187
      %p191 = pneg %p185
      %p192 = scmp.eq.s32.totalorder %s26, 3
      %p193 = por %p191, %p192
      %p194 = scmp.ne.s32.totalorder %s186, %s189
      %p195 = scmp.eq.s32.totalorder %s26, 0
      %p196 = por %p194, %p195
      %p197 = scmp.ne.s32.totalorder %s186, %s189
      %p198 = scmp.eq.s32.totalorder %s31, 3
      %p199 = por %p197, %p198
      %p200 = scmp.ne.s32.totalorder %s189, %s190
      %p201 = scmp.eq.s32.totalorder %s31, 0
      %p202 = por %p200, %p201
      %p203 = scmp.ne.s32.totalorder %s189, %s190
      %p204 = scmp.eq.s32.totalorder %s32, 3
      %p205 = por %p203, %p204
      %p207 = scmp.ne.s32.totalorder %s190, %s206
      %p208 = scmp.eq.s32.totalorder %s32, 0
      %p209 = por %p207, %p208
      %s210 = ssub.s32 %s33, %s45
      %s211 = ssub.s32 %s34, %s41
      %s212 = sor.u32 %s210, %s211
      %p213 = scmp.eq.s32.totalorder %s212, 0
      %s215 = sadd.s32 %s214, 1
      %s216 = scalar_select %p213, %s214, %s215
      %p219 = pneg %p213
      %p220 = scmp.eq.s32.totalorder %s26, 3
      %p221 = por %p219, %p220
      %p222 = scmp.ne.s32.totalorder %s214, %s217
      %p223 = scmp.eq.s32.totalorder %s26, 0
      %p224 = por %p222, %p223
      %p225 = scmp.ne.s32.totalorder %s214, %s217
      %p226 = scmp.eq.s32.totalorder %s31, 3
      %p227 = por %p225, %p226
      %p228 = scmp.ne.s32.totalorder %s217, %s218
      %p229 = scmp.eq.s32.totalorder %s31, 0
      %p230 = por %p228, %p229
      %p231 = scmp.ne.s32.totalorder %s217, %s218
      %p232 = scmp.eq.s32.totalorder %s32, 3
      %p233 = por %p231, %p232
      %p235 = scmp.ne.s32.totalorder %s218, %s234
      %p236 = scmp.eq.s32.totalorder %s32, 0
      %p237 = por %p235, %p236
      %p238 = scmp.le.s32.totalorder 1, %s26
      %p239 = scmp.lt.s32.totalorder %s26, 5
      %p240 = pnand %p238, %p239
      %p241 = pneg %p240
      // Predicated region
      $region9: #{tpu_custom_call.1} parent=5 // pred_check
        _
      $region10: #{tpu_custom_call.1} parent=5 // pred_check_branch
        %243 = sbr.rel (%p240) target = $region12
      $region11: #{tpu_custom_call.1} parent=5 // pred_region
        %s244 = ssub.s32 %s26, 1
        // Predicated region
        $region13: #{tpu_custom_call.1} parent=11 // pred_check
          %p245 = pneg %p153
        $region14: #{tpu_custom_call.1} parent=11 // pred_check_branch
          %247 = sbr.rel (%p245) target = $region16
        $region15: #{tpu_custom_call.1} parent=11 // pred_region
          %s249 = ssub.s32 768, 768
          %250 = vsyncadd [#allocation9], %s249
          %s251 = sshll.u32 [#allocation8], 4
          %s252 = int_to_ptr.vmem [resolvable:$true] %s251
          %257 = dma.hbm_to_vmem [thread:$0]  %s3, 768, %s252, [#allocation9], 128, 128, 8
        $region16: #{tpu_custom_call.1} parent=11 // pred_fallthru
          _
        // Predicated region
        $region17: #{tpu_custom_call.1} parent=11 // pred_check
          %p258 = pneg %p174
        $region18: #{tpu_custom_call.1} parent=11 // pred_check_branch
          %260 = sbr.rel (%p258) target = $region20
        $region19: #{tpu_custom_call.1} parent=11 // pred_region
          %s262 = ssub.s32 16, 16
          %263 = vsyncadd [#allocation9], %s262
          %s265 = sshll.u32 [#allocation10], 4
          %s266 = int_to_ptr.vmem [resolvable:$true] %s265
          %268 = dma.hbm_to_vmem [thread:$0]  %s4, 16, %s266, [#allocation9]
        $region20: #{tpu_custom_call.1} parent=11 // pred_fallthru
          _
      $region12: #{tpu_custom_call.1} parent=5 // pred_fallthru
        _
      %p269 = scmp.lt.s32.totalorder %s26, 4
      // Predicated region
      $region21: #{tpu_custom_call.1} parent=5 // pred_check
        %p270 = pneg %p269
      $region22: #{tpu_custom_call.1} parent=5 // pred_check_branch
        %272 = sbr.rel (%p270) target = $region24
      $region23: #{tpu_custom_call.1} parent=5 // pred_region
        // Predicated region
        $region25: #{tpu_custom_call.1} parent=23 // pred_check
          %p273 = pneg %p60
        $region26: #{tpu_custom_call.1} parent=23 // pred_check_branch
          %275 = sbr.rel (%p273) target = $region28
        $region27: #{tpu_custom_call.1} parent=23 // pred_region
          %s276 = sand.u32 %s50, 1
          %s277 = scalar_lea.sflag [#allocation3], %s276
          %s278 = sand.u32 %s50, 1
          %s279 = smul.addr %s278, 192
          %s280 = scalar_lea.vmem [#allocation2], %s279
          %s281 = smul.u32 8, %s34
          %s282 = ssub.s32 18, %s281
          %p283 = scmp.lt.s32.totalorder %s282, 8
          %s284 = scalar_select %p283, %s282, 8
          %s285 = smul.u32 128, %s284
          %s286 = smul.u32 %s285, 3
          %s288 = ssub.s32 3072, %s286
          %289 = vsyncadd %s277, %s288
          %p290 = scmp.ne.s32.totalorder 0, %s286
          %s291 = smul.addr %s281, 3
          %s292 = smul.addr %s33, 54
          %s293 = sadd.s32 %s291, %s292
          %s294 = smul.addr %s293, 128
          %s295 = scalar_lea.hbm %s0, %s294
          %s296 = smul.u32 %s284, 3
          %s297 = smul.u32 8, %s296
          %s298 = sshll.u32 %s280, 4
          %s299 = int_to_ptr.vmem [resolvable:$true] %s298
          %s300 = sshll.u32 %s297, 4
          %304 = dma.hbm_to_vmem [thread:$0]  (%p290), %s295, %s300, %s299, %s277, 128, 128, 8
        $region28: #{tpu_custom_call.1} parent=23 // pred_fallthru
          _
        // Predicated region
        $region29: #{tpu_custom_call.1} parent=23 // pred_check
          %p305 = pneg %p92
        $region30: #{tpu_custom_call.1} parent=23 // pred_check_branch
          %307 = sbr.rel (%p305) target = $region32
        $region31: #{tpu_custom_call.1} parent=23 // pred_region
          %s308 = sand.u32 %s26, 1
          %s309 = scalar_lea.sflag [#allocation6], %s308
          %s310 = sand.u32 %s82, 1
          %s311 = smul.addr %s310, 24
          %s312 = scalar_lea.vmem [#allocation5], %s311
          %s313 = sadd.s32 %s34, 1
          %s314 = smul.u32 %s313, 8
          %s316 = ssub.s32 384, 384
          %317 = vsyncadd %s309, %s316
          %s318 = smul.addr %s314, 3
          %s319 = smul.addr %s33, 54
          %s320 = sadd.s32 %s318, %s319
          %s321 = smul.addr %s320, 128
          %s322 = scalar_lea.hbm %s1, %s321
          %s323 = sshll.u32 %s312, 4
          %s324 = int_to_ptr.vmem [resolvable:$true] %s323
          %329 = dma.hbm_to_vmem [thread:$0]  %s322, 384, %s324, %s309, 128, 128, 8
        $region32: #{tpu_custom_call.1} parent=23 // pred_fallthru
          _
        // Predicated region
        $region33: #{tpu_custom_call.1} parent=23 // pred_check
          %p330 = pneg %p126
        $region34: #{tpu_custom_call.1} parent=23 // pred_check_branch
          %332 = sbr.rel (%p330) target = $region36
        $region35: #{tpu_custom_call.1} parent=23 // pred_region
          %s333 = sand.u32 %s26, 1
          %s334 = scalar_lea.sflag [#allocation6], %s333
          %s335 = sand.u32 %s116, 1
          %s336 = smul.addr %s335, 24
          %s337 = scalar_lea.vmem [#allocation7], %s336
          %s338 = sadd.s32 %s34, 1
          %s339 = smul.u32 %s338, 8
          %s340 = sadd.s32 %s339, 1
          %s342 = ssub.s32 384, 384
          %343 = vsyncadd %s334, %s342
          %s344 = smul.addr %s340, 3
          %s345 = smul.addr %s33, 54
          %s346 = sadd.s32 %s344, %s345
          %s347 = smul.addr %s346, 128
          %s348 = scalar_lea.hbm %s2, %s347
          %s349 = sshll.u32 %s337, 4
          %s350 = int_to_ptr.vmem [resolvable:$true] %s349
          %355 = dma.hbm_to_vmem [thread:$0]  %s348, 384, %s350, %s334, 128, 128, 8
        $region36: #{tpu_custom_call.1} parent=23 // pred_fallthru
          _
      $region24: #{tpu_custom_call.1} parent=5 // pred_fallthru
        _
      %p356 = scmp.le.s32.totalorder 1, %s26
      %p357 = scmp.lt.s32.totalorder %s26, 5
      %p358 = pnand %p356, %p357
      %p359 = pneg %p358
      // Predicated region
      $region37: #{tpu_custom_call.1} parent=5 // pred_check
        _
      $region38: #{tpu_custom_call.1} parent=5 // pred_check_branch
        %361 = sbr.rel (%p358) target = $region40
      $region39: #{tpu_custom_call.1} parent=5 // pred_region
        %s362 = ssub.s32 %s26, 1
        %s363 = sand.u32 %s53, 1
        %s364 = scalar_lea.sflag [#allocation3], %s363
        %s365 = sand.u32 %s53, 1
        %s366 = smul.addr %s365, 192
        %s367 = scalar_lea.vmem [#allocation2], %s366
        // Predicated region
        $region41: #{tpu_custom_call.1} parent=39 // pred_check
          %p368 = pneg %p66
        $region42: #{tpu_custom_call.1} parent=39 // pred_check_branch
          %370 = sbr.rel (%p368) target = $region44
        $region43: #{tpu_custom_call.1} parent=39 // pred_region
          %371 = dma.done %s364, 3072
        $region44: #{tpu_custom_call.1} parent=39 // pred_fallthru
          _
        %s372 = sand.u32 %s31, 1
        %s373 = scalar_lea.sflag [#allocation6], %s372
        %s374 = sand.u32 %s85, 1
        %s375 = smul.addr %s374, 24
        %s376 = scalar_lea.vmem [#allocation5], %s375
        // Predicated region
        $region45: #{tpu_custom_call.1} parent=39 // pred_check
          %p377 = pneg %p98
        $region46: #{tpu_custom_call.1} parent=39 // pred_check_branch
          %379 = sbr.rel (%p377) target = $region48
        $region47: #{tpu_custom_call.1} parent=39 // pred_region
          %380 = dma.done %s373, 384
        $region48: #{tpu_custom_call.1} parent=39 // pred_fallthru
          _
        %s381 = sand.u32 %s31, 1
        %s382 = scalar_lea.sflag [#allocation6], %s381
        %s383 = sand.u32 %s119, 1
        %s384 = smul.addr %s383, 24
        %s385 = scalar_lea.vmem [#allocation7], %s384
        // Predicated region
        $region49: #{tpu_custom_call.1} parent=39 // pred_check
          %p386 = pneg %p132
        $region50: #{tpu_custom_call.1} parent=39 // pred_check_branch
          %388 = sbr.rel (%p386) target = $region52
        $region51: #{tpu_custom_call.1} parent=39 // pred_region
          %389 = dma.done %s382, 384
        $region52: #{tpu_custom_call.1} parent=39 // pred_fallthru
          _
        // Predicated region
        $region53: #{tpu_custom_call.1} parent=39 // pred_check
          %p390 = pneg %p153
        $region54: #{tpu_custom_call.1} parent=39 // pred_check_branch
          %392 = sbr.rel (%p390) target = $region56
        $region55: #{tpu_custom_call.1} parent=39 // pred_region
          %393 = dma.done [#allocation9], 768
        $region56: #{tpu_custom_call.1} parent=39 // pred_fallthru
          _
        // Predicated region
        $region57: #{tpu_custom_call.1} parent=39 // pred_check
          %p394 = pneg %p174
        $region58: #{tpu_custom_call.1} parent=39 // pred_check_branch
          %396 = sbr.rel (%p394) target = $region60
        $region59: #{tpu_custom_call.1} parent=39 // pred_region
          %397 = dma.done [#allocation9], 16
        $region60: #{tpu_custom_call.1} parent=39 // pred_fallthru
          _
        %s398 = sand.u32 %s53, 1
        %s399 = scalar_lea.sflag [#allocation3], %s398
        %s400 = sand.u32 %s53, 1
        %s401 = smul.addr %s400, 192
        %s402 = scalar_lea.vmem [#allocation2], %s401
        %p403 = pneg %p66
        %p404 = pneg %p63
        %s405 = sand.u32 %s31, 1
        %s406 = scalar_lea.sflag [#allocation6], %s405
        %s407 = sand.u32 %s85, 1
        %s408 = smul.addr %s407, 24
        %s409 = scalar_lea.vmem [#allocation5], %s408
        %p410 = pneg %p98
        %p411 = pneg %p95
        %s412 = sand.u32 %s31, 1
        %s413 = scalar_lea.sflag [#allocation6], %s412
        %s414 = sand.u32 %s119, 1
        %s415 = smul.addr %s414, 24
        %s416 = scalar_lea.vmem [#allocation7], %s415
        %p417 = pneg %p132
        %p418 = pneg %p129
        %p419 = pneg %p153
        %p420 = pneg %p150
        %p421 = pneg %p174
        %p422 = pneg %p171
        %p423 = pneg %p202
        %p424 = pneg %p199
        %s425 = sand.u32 %s189, 1
        %s426 = scalar_lea.sflag [#allocation4], %s425
        %s427 = sand.u32 %s189, 1
        %s428 = smul.addr %s427, 128
        %s429 = scalar_lea.vmem [#allocation11], %s428
        %p430 = pneg %p230
        %p431 = pneg %p227
        %s432 = sand.u32 %s217, 1
        %s433 = scalar_lea.sflag [#allocation13], %s432
        %s434 = sand.u32 %s217, 1
        %s435 = smul.addr %s434, 2
        %s436 = scalar_lea.vmem [#allocation12], %s435
        %s437 = smul.u32 8, %s36
        %s438 = ssub.s32 18, %s437
        %p439 = scmp.lt.s32.totalorder %s438, 8
        %s440 = scalar_select %p439, %s438, 8
        %s441 = smul.u32 128, %s440
        %s442 = smul.u32 %s441, 3
        %s443 = sadd.s32 %s36, 1
        %s444 = smul.u32 %s443, 8
        %s445 = sadd.s32 %s36, 1
        %s446 = smul.u32 %s445, 8
        %s447 = sadd.s32 %s446, 1
        %s448 = smul.u32 16, %s36
        %v449 = vld [vmem:[%s367] sm:$0xff]
        %v450 = vld [vmem:[%s367 + $0x8] sm:$0xff]
        %v451 = vld [vmem:[%s367 + $0x10] sm:$0x3]
        %v452 = vld [vmem:[%s367 + $0x18] sm:$0xff]
        %v453 = vld [vmem:[%s367 + $0x20] sm:$0xff]
        %v454 = vld [vmem:[%s367 + $0x28] sm:$0x3]
        %v455 = vld [vmem:[%s367 + $0x30] sm:$0xff]
        %v456 = vld [vmem:[%s367 + $0x38] sm:$0xff]
        %v457 = vld [vmem:[%s367 + $0x40] sm:$0x3]
        %v458 = vld [vmem:[%s367 + $0x48] sm:$0xff]
        %v459 = vld [vmem:[%s367 + $0x50] sm:$0xff]
        %v460 = vld [vmem:[%s367 + $0x58] sm:$0x3]
        %v461 = vld [vmem:[%s367 + $0x60] sm:$0xff]
        %v462 = vld [vmem:[%s367 + $0x68] sm:$0xff]
        %v463 = vld [vmem:[%s367 + $0x70] sm:$0x3]
        %v464 = vld [vmem:[%s367 + $0x78] sm:$0xff]
        %v465 = vld [vmem:[%s367 + $0x80] sm:$0xff]
        %v466 = vld [vmem:[%s367 + $0x88] sm:$0x3]
        %v467 = vld [vmem:[%s367 + $0x90] sm:$0xff]
        %v468 = vld [vmem:[%s367 + $0x98] sm:$0xff]
        %v469 = vld [vmem:[%s367 + $0xa0] sm:$0x3]
        %v470 = vld [vmem:[%s367 + $0xa8] sm:$0xff]
        %v471 = vld [vmem:[%s367 + $0xb0] sm:$0xff]
        %v472 = vld [vmem:[%s367 + $0xb8] sm:$0x3]
        %v473 = vld [vmem:[%s376] sm:$0xff]
        %v474 = vld [vmem:[%s376 + $0x8] sm:$0xff]
        %v475 = vld [vmem:[%s376 + $0x10] sm:$0x3]
        %v476 = vld [vmem:[%s385] sm:$0xff]
        %v477 = vld [vmem:[%s385 + $0x8] sm:$0xff]
        %v478 = vld [vmem:[%s385 + $0x10] sm:$0x3]
        %vm509 = vcmask 1046528
        %v510 = vrot.slane %v449, 1
        %v511 = vrot.slane %v450, 1
        %v512 = vsel %vm509, %v510, %v511
        %v513 = vrot.slane %v451, 1
        %v514 = vsel %vm509, %v511, %v513
        %v515 = vrot.slane %v452, 1
        %v516 = vrot.slane %v453, 1
        %v517 = vsel %vm509, %v515, %v516
        %v518 = vrot.slane %v454, 1
        %v519 = vsel %vm509, %v516, %v518
        %v520 = vrot.slane %v455, 1
        %v521 = vrot.slane %v456, 1
        %v522 = vsel %vm509, %v520, %v521
        %v523 = vrot.slane %v457, 1
        %v524 = vsel %vm509, %v521, %v523
        %v525 = vrot.slane %v458, 1
        %v526 = vrot.slane %v459, 1
        %v527 = vsel %vm509, %v525, %v526
        %v528 = vrot.slane %v460, 1
        %v529 = vsel %vm509, %v526, %v528
        %v530 = vrot.slane %v461, 1
        %v531 = vrot.slane %v462, 1
        %v532 = vsel %vm509, %v530, %v531
        %v533 = vrot.slane %v463, 1
        %v534 = vsel %vm509, %v531, %v533
        %v535 = vrot.slane %v464, 1
        %v536 = vrot.slane %v465, 1
        %v537 = vsel %vm509, %v535, %v536
        %v538 = vrot.slane %v466, 1
        %v539 = vsel %vm509, %v536, %v538
        %v540 = vrot.slane %v467, 1
        %v541 = vrot.slane %v468, 1
        %v542 = vsel %vm509, %v540, %v541
        %v543 = vrot.slane %v469, 1
        %v544 = vsel %vm509, %v541, %v543
        %v545 = vrot.slane %v470, 1
        %v546 = vrot.slane %v471, 1
        %v547 = vsel %vm509, %v545, %v546
        %v548 = vrot.slane %v472, 1
        %v549 = vsel %vm509, %v546, %v548
        %v550 = vrot.slane %v473, 1
        %v551 = vrot.slane %v474, 1
        %v552 = vsel %vm509, %v550, %v551
        %v553 = vrot.slane %v475, 1
        %v554 = vsel %vm509, %v551, %v553
        %v555 = vrot.slane %v476, 1
        %v556 = vrot.slane %v477, 1
        %v557 = vsel %vm509, %v555, %v556
        %v558 = vrot.slane %v478, 1
        %v559 = vsel %vm509, %v556, %v558
        %560 = vrot.lane.b32.xlu0 %v512, 4
        %v561 = vpop.permute.xlu0 %560
        %562 = vrot.lane.b32.xlu0 %v514, 4
        %v563 = vpop.permute.xlu0 %562
        %564 = vrot.lane.b32.xlu0 %v517, 4
        %v565 = vpop.permute.xlu0 %564
        %566 = vrot.lane.b32.xlu0 %v519, 4
        %v567 = vpop.permute.xlu0 %566
        %568 = vrot.lane.b32.xlu0 %v522, 4
        %v569 = vpop.permute.xlu0 %568
        %570 = vrot.lane.b32.xlu0 %v524, 4
        %v571 = vpop.permute.xlu0 %570
        %572 = vrot.lane.b32.xlu0 %v527, 4
        %v573 = vpop.permute.xlu0 %572
        %574 = vrot.lane.b32.xlu0 %v529, 4
        %v575 = vpop.permute.xlu0 %574
        %576 = vrot.lane.b32.xlu0 %v532, 4
        %v577 = vpop.permute.xlu0 %576
        %578 = vrot.lane.b32.xlu0 %v534, 4
        %v579 = vpop.permute.xlu0 %578
        %580 = vrot.lane.b32.xlu0 %v537, 4
        %v581 = vpop.permute.xlu0 %580
        %582 = vrot.lane.b32.xlu0 %v539, 4
        %v583 = vpop.permute.xlu0 %582
        %584 = vrot.lane.b32.xlu0 %v542, 4
        %v585 = vpop.permute.xlu0 %584
        %586 = vrot.lane.b32.xlu0 %v544, 4
        %v587 = vpop.permute.xlu0 %586
        %588 = vrot.lane.b32.xlu0 %v547, 4
        %v589 = vpop.permute.xlu0 %588
        %590 = vrot.lane.b32.xlu0 %v549, 4
        %v591 = vpop.permute.xlu0 %590
        %592 = vrot.lane.b32.xlu0 %v552, 4
        %v593 = vpop.permute.xlu0 %592
        %594 = vrot.lane.b32.xlu0 %v554, 4
        %v595 = vpop.permute.xlu0 %594
        %596 = vrot.lane.b32.xlu0 %v557, 4
        %v597 = vpop.permute.xlu0 %596
        %598 = vrot.lane.b32.xlu0 %v559, 4
        %v599 = vpop.permute.xlu0 %598
        %vm620 = vcmask 1045504
        %v621 = vrot.slane %v449, 2
        %v622 = vrot.slane %v450, 2
        %v623 = vsel %vm620, %v621, %v622
        %v624 = vrot.slane %v451, 2
        %v625 = vsel %vm620, %v622, %v624
        %v626 = vrot.slane %v452, 2
        %v627 = vrot.slane %v453, 2
        %v628 = vsel %vm620, %v626, %v627
        %v629 = vrot.slane %v454, 2
        %v630 = vsel %vm620, %v627, %v629
        %v631 = vrot.slane %v455, 2
        %v632 = vrot.slane %v456, 2
        %v633 = vsel %vm620, %v631, %v632
        %v634 = vrot.slane %v457, 2
        %v635 = vsel %vm620, %v632, %v634
        %v636 = vrot.slane %v458, 2
        %v637 = vrot.slane %v459, 2
        %v638 = vsel %vm620, %v636, %v637
        %v639 = vrot.slane %v460, 2
        %v640 = vsel %vm620, %v637, %v639
        %v641 = vrot.slane %v461, 2
        %v642 = vrot.slane %v462, 2
        %v643 = vsel %vm620, %v641, %v642
        %v644 = vrot.slane %v463, 2
        %v645 = vsel %vm620, %v642, %v644
        %v646 = vrot.slane %v464, 2
        %v647 = vrot.slane %v465, 2
        %v648 = vsel %vm620, %v646, %v647
        %v649 = vrot.slane %v466, 2
        %v650 = vsel %vm620, %v647, %v649
        %v651 = vrot.slane %v467, 2
        %v652 = vrot.slane %v468, 2
        %v653 = vsel %vm620, %v651, %v652
        %v654 = vrot.slane %v469, 2
        %v655 = vsel %vm620, %v652, %v654
        %v656 = vrot.slane %v470, 2
        %v657 = vrot.slane %v471, 2
        %v658 = vsel %vm620, %v656, %v657
        %v659 = vrot.slane %v472, 2
        %v660 = vsel %vm620, %v657, %v659
        %v661 = vrot.slane %v473, 2
        %v662 = vrot.slane %v474, 2
        %v663 = vsel %vm620, %v661, %v662
        %v664 = vrot.slane %v475, 2
        %v665 = vsel %vm620, %v662, %v664
        %v666 = vrot.slane %v476, 2
        %v667 = vrot.slane %v477, 2
        %v668 = vsel %vm620, %v666, %v667
        %v669 = vrot.slane %v478, 2
        %v670 = vsel %vm620, %v667, %v669
        %671 = vrot.lane.b32.xlu0 %v623, 8
        %v672 = vpop.permute.xlu0 %671
        %673 = vrot.lane.b32.xlu0 %v625, 8
        %v674 = vpop.permute.xlu0 %673
        %675 = vrot.lane.b32.xlu0 %v628, 8
        %v676 = vpop.permute.xlu0 %675
        %677 = vrot.lane.b32.xlu0 %v630, 8
        %v678 = vpop.permute.xlu0 %677
        %679 = vrot.lane.b32.xlu0 %v633, 8
        %v680 = vpop.permute.xlu0 %679
        %681 = vrot.lane.b32.xlu0 %v635, 8
        %v682 = vpop.permute.xlu0 %681
        %683 = vrot.lane.b32.xlu0 %v638, 8
        %v684 = vpop.permute.xlu0 %683
        %685 = vrot.lane.b32.xlu0 %v640, 8
        %v686 = vpop.permute.xlu0 %685
        %687 = vrot.lane.b32.xlu0 %v643, 8
        %v688 = vpop.permute.xlu0 %687
        %689 = vrot.lane.b32.xlu0 %v645, 8
        %v690 = vpop.permute.xlu0 %689
        %691 = vrot.lane.b32.xlu0 %v648, 8
        %v692 = vpop.permute.xlu0 %691
        %693 = vrot.lane.b32.xlu0 %v650, 8
        %v694 = vpop.permute.xlu0 %693
        %695 = vrot.lane.b32.xlu0 %v653, 8
        %v696 = vpop.permute.xlu0 %695
        %697 = vrot.lane.b32.xlu0 %v655, 8
        %v698 = vpop.permute.xlu0 %697
        %699 = vrot.lane.b32.xlu0 %v658, 8
        %v700 = vpop.permute.xlu0 %699
        %701 = vrot.lane.b32.xlu0 %v660, 8
        %v702 = vpop.permute.xlu0 %701
        %703 = vrot.lane.b32.xlu0 %v663, 8
        %v704 = vpop.permute.xlu0 %703
        %705 = vrot.lane.b32.xlu0 %v665, 8
        %v706 = vpop.permute.xlu0 %705
        %707 = vrot.lane.b32.xlu0 %v668, 8
        %v708 = vpop.permute.xlu0 %707
        %709 = vrot.lane.b32.xlu0 %v670, 8
        %v710 = vpop.permute.xlu0 %709
        %vm731 = vcmask 31744
        %v732 = vsel %vm731, %v449, %v561
        %v733 = vsel %vm731, %v450, %v563
        %v734 = vsel %vm731, %v452, %v565
        %v735 = vsel %vm731, %v453, %v567
        %v736 = vsel %vm731, %v455, %v569
        %v737 = vsel %vm731, %v456, %v571
        %v738 = vsel %vm731, %v458, %v573
        %v739 = vsel %vm731, %v459, %v575
        %v740 = vsel %vm731, %v461, %v577
        %v741 = vsel %vm731, %v462, %v579
        %v742 = vsel %vm731, %v464, %v581
        %v743 = vsel %vm731, %v465, %v583
        %v744 = vsel %vm731, %v467, %v585
        %v745 = vsel %vm731, %v468, %v587
        %v746 = vsel %vm731, %v470, %v589
        %v747 = vsel %vm731, %v471, %v591
        %v748 = vsel %vm731, %v473, %v593
        %v749 = vsel %vm731, %v474, %v595
        %v750 = vsel %vm731, %v476, %v597
        %v751 = vsel %vm731, %v477, %v599
        %vm752 = vcmask 64512
        %v753 = vsel %vm752, %v732, %v672
        %v754 = vsel %vm752, %v733, %v674
        %v755 = vsel %vm752, %v734, %v676
        %v756 = vsel %vm752, %v735, %v678
        %v757 = vsel %vm752, %v736, %v680
        %v758 = vsel %vm752, %v737, %v682
        %v759 = vsel %vm752, %v738, %v684
        %v760 = vsel %vm752, %v739, %v686
        %v761 = vsel %vm752, %v740, %v688
        %v762 = vsel %vm752, %v741, %v690
        %v763 = vsel %vm752, %v742, %v692
        %v764 = vsel %vm752, %v743, %v694
        %v765 = vsel %vm752, %v744, %v696
        %v766 = vsel %vm752, %v745, %v698
        %v767 = vsel %vm752, %v746, %v700
        %v768 = vsel %vm752, %v747, %v702
        %v769 = vsel %vm752, %v748, %v704
        %v770 = vsel %vm752, %v749, %v706
        %v771 = vsel %vm752, %v750, %v708
        %v772 = vsel %vm752, %v751, %v710
        %v773 = vld [vmem:[#allocation8] sm:$0xff]
        %v774 = vld [vmem:[#allocation8 + $0x8] sm:$0xf]
        %s775 = scalar_lea.vmem [#allocation8], 16
        %v776 = vld [vmem:[%s775] sm:$0xff]
        %v777 = vld [vmem:[%s775 + $0x8] sm:$0xf]
        %vm778 = vcmask 97280
        %v780 = vsel %vm778, %v755, 0
        %v783 = vsel %vm778, %v756, 0
        %v786 = vsel %vm778, %v757, 0
        %v789 = vsel %vm778, %v758, 0
        %v792 = vsel %vm778, %v759, 0
        %v795 = vsel %vm778, %v760, 0
        %v798 = vsel %vm778, %v761, 0
        %v801 = vsel %vm778, %v762, 0
        %v804 = vsel %vm778, %v763, 0
        %v807 = vsel %vm778, %v764, 0
        %v810 = vsel %vm778, %v765, 0
        %v813 = vsel %vm778, %v766, 0
        %v816 = vsel %vm778, %v767, 0
        %v819 = vsel %vm778, %v768, 0
        %v822 = vsel %vm778, %v769, 0
        %v825 = vsel %vm778, %v770, 0
        %vm827 = vcmask 1043456
        %v829 = vsel %vm827, %v777, 0
        %831 = vmatprep.subr.mxu0 0.0
        %832 = vmatpush1.msra.mxu0 %v776
        %833 = vmatprep.subr.mxu0 0.0
        %834 = vmatpush1.msra.mxu0 %v829
        %835 = vmatprep.subr.mxu0 0.0
        %836 = vmatpush1.msra.mxu0 0.0
        %837 = vmatprep.subr.mxu0 0.0
        %838 = vmatpush1.msra.mxu0 0.0
        %839 = vmatprep.subr.mxu0 0.0
        %840 = vmatpush1.msra.mxu0 0.0
        %841 = vmatprep.subr.mxu0 0.0
        %842 = vmatpush1.msra.mxu0 0.0
        %843 = vmatprep.subr.mxu0 0.0
        %844 = vmatpush1.msra.mxu0 0.0
        %845 = vmatprep.subr.mxu0 0.0
        %846 = vmatpush1.msra.mxu0 0.0
        %847 = vmatprep.subr.mxu0 0.0
        %848 = vmatpush1.msra.mxu0 0.0
        %849 = vmatprep.subr.mxu0 0.0
        %850 = vmatpush1.msra.mxu0 0.0
        %851 = vmatprep.subr.mxu0 0.0
        %852 = vmatpush1.msra.mxu0 0.0
        %853 = vmatprep.subr.mxu0 0.0
        %854 = vmatpush1.msra.mxu0 0.0
        %855 = vmatprep.subr.mxu0 0.0
        %856 = vmatpush1.msra.mxu0 0.0
        %857 = vmatprep.subr.mxu0 0.0
        %858 = vmatpush1.msra.mxu0 0.0
        %859 = vmatprep.subr.mxu0 0.0
        %860 = vmatpush1.msra.mxu0 0.0
        %861 = vmatprep.subr.mxu0 0.0
        %862 = vmatpush1.msra.mxu0 0.0
        %863 = vmatprep.subr.mxu0 0.0
        %864 = vmatpush1.msra.mxu0 0.0
        %865 = vmatprep.subr.mxu0 0.0
        %866 = vmatpush1.msra.mxu0 0.0
        %867 = vmatprep.subr.mxu0 0.0
        %868 = vmatpush1.msra.mxu0 0.0
        %869 = vmatprep.subr.mxu0 0.0
        %870 = vmatpush1.msra.mxu0 0.0
        %871 = vmatprep.subr.mxu0 0.0
        %872 = vmatpush1.msra.mxu0 0.0
        %873 = vmatprep.subr.mxu0 0.0
        %874 = vmatpush1.msra.mxu0 0.0
        %875 = vmatprep.subr.mxu0 0.0
        %876 = vmatpush1.msra.mxu0 0.0
        %877 = vmatprep.subr.mxu0 0.0
        %878 = vmatpush1.msra.mxu0 0.0
        %879 = vmatprep.subr.mxu0 0.0
        %880 = vmatpush1.msra.mxu0 0.0
        %881 = vmatprep.subr.mxu0 0.0
        %882 = vmatpush1.msra.mxu0 0.0
        %883 = vmatprep.subr.mxu0 0.0
        %884 = vmatpush1.msra.mxu0 0.0
        %885 = vmatprep.subr.mxu0 0.0
        %886 = vmatpush1.msra.mxu0 0.0
        %887 = vmatprep.subr.mxu0 0.0
        %888 = vmatpush1.msra.mxu0 0.0
        %889 = vmatprep.subr.mxu0 0.0
        %890 = vmatpush1.msra.mxu0 0.0
        %891 = vmatprep.subr.mxu0 0.0
        %892 = vmatpush1.msra.mxu0 0.0
        %893 = vmatprep.subr.mxu0 0.0
        %894 = vmatpush1.msra.mxu0 0.0
        %895 = vmatprep.mubr.f32.mxu0 0.0
        %896 = vmatmul.mubr.f32.gmra.mrb[0].mxu0 %v780
        %v897 = vpop.f32.mrb[0].mxu0
        %v898 = vadd.f32 0.0, %v897
        %v899 = vpop.f32.mrb[0].mxu0
        %900 = vmatprep.mubr.f32.mxu0 0.0
        %901 = vmatmul.mubr.f32.gmra.mrb[0].mxu0 %v783
        %v902 = vpop.f32.mrb[0].mxu0
        %v903 = vadd.f32 0.0, %v902
        %v904 = vpop.f32.mrb[0].mxu0
        %905 = vmatprep.mubr.f32.mxu0 0.0
        %906 = vmatmul.mubr.f32.gmra.mrb[0].mxu0 %v786
        %v907 = vpop.f32.mrb[0].mxu0
        %v908 = vadd.f32 0.0, %v907
        %v909 = vpop.f32.mrb[0].mxu0
        %910 = vmatprep.mubr.f32.mxu0 0.0
        %911 = vmatmul.mubr.f32.gmra.mrb[0].mxu0 %v789
        %v912 = vpop.f32.mrb[0].mxu0
        %v913 = vadd.f32 0.0, %v912
        %v914 = vpop.f32.mrb[0].mxu0
        %915 = vmatprep.mubr.f32.mxu0 0.0
        %916 = vmatmul.mubr.f32.gmra.mrb[0].mxu0 %v792
        %v917 = vpop.f32.mrb[0].mxu0
        %v918 = vadd.f32 0.0, %v917
        %v919 = vpop.f32.mrb[0].mxu0
        %920 = vmatprep.mubr.f32.mxu0 0.0
        %921 = vmatmul.mubr.f32.gmra.mrb[0].mxu0 %v795
        %v922 = vpop.f32.mrb[0].mxu0
        %v923 = vadd.f32 0.0, %v922
        %v924 = vpop.f32.mrb[0].mxu0
        %925 = vmatprep.mubr.f32.mxu0 0.0
        %926 = vmatmul.mubr.f32.gmra.mrb[0].mxu0 %v798
        %v927 = vpop.f32.mrb[0].mxu0
        %v928 = vadd.f32 0.0, %v927
        %v929 = vpop.f32.mrb[0].mxu0
        %930 = vmatprep.mubr.f32.mxu0 0.0
        %931 = vmatmul.mubr.f32.gmra.mrb[0].mxu0 %v801
        %v932 = vpop.f32.mrb[0].mxu0
        %v933 = vadd.f32 0.0, %v932
        %v934 = vpop.f32.mrb[0].mxu0
        %935 = vmatprep.mubr.f32.mxu0 0.0
        %936 = vmatmul.mubr.f32.gmra.mrb[0].mxu0 %v804
        %v937 = vpop.f32.mrb[0].mxu0
        %v938 = vadd.f32 0.0, %v937
        %v939 = vpop.f32.mrb[0].mxu0
        %940 = vmatprep.mubr.f32.mxu0 0.0
        %941 = vmatmul.mubr.f32.gmra.mrb[0].mxu0 %v807
        %v942 = vpop.f32.mrb[0].mxu0
        %v943 = vadd.f32 0.0, %v942
        %v944 = vpop.f32.mrb[0].mxu0
        %945 = vmatprep.mubr.f32.mxu0 0.0
        %946 = vmatmul.mubr.f32.gmra.mrb[0].mxu0 %v810
        %v947 = vpop.f32.mrb[0].mxu0
        %v948 = vadd.f32 0.0, %v947
        %v949 = vpop.f32.mrb[0].mxu0
        %950 = vmatprep.mubr.f32.mxu0 0.0
        %951 = vmatmul.mubr.f32.gmra.mrb[0].mxu0 %v813
        %v952 = vpop.f32.mrb[0].mxu0
        %v953 = vadd.f32 0.0, %v952
        %v954 = vpop.f32.mrb[0].mxu0
        %955 = vmatprep.mubr.f32.mxu0 0.0
        %956 = vmatmul.mubr.f32.gmra.mrb[0].mxu0 %v816
        %v957 = vpop.f32.mrb[0].mxu0
        %v958 = vadd.f32 0.0, %v957
        %v959 = vpop.f32.mrb[0].mxu0
        %960 = vmatprep.mubr.f32.mxu0 0.0
        %961 = vmatmul.mubr.f32.gmra.mrb[0].mxu0 %v819
        %v962 = vpop.f32.mrb[0].mxu0
        %v963 = vadd.f32 0.0, %v962
        %v964 = vpop.f32.mrb[0].mxu0
        %965 = vmatprep.mubr.f32.mxu0 0.0
        %966 = vmatmul.mubr.f32.gmra.mrb[0].mxu0 %v822
        %v967 = vpop.f32.mrb[0].mxu0
        %v968 = vadd.f32 0.0, %v967
        %v969 = vpop.f32.mrb[0].mxu0
        %970 = vmatprep.mubr.f32.mxu0 0.0
        %971 = vmatmul.mubr.f32.gmra.mrb[0].mxu0 %v825
        %v972 = vpop.f32.mrb[0].mxu0
        %v973 = vadd.f32 0.0, %v972
        %v974 = vpop.f32.mrb[0].mxu0
        %975 = vdwg.mxu0
        %v977 = vsel %vm778, %v753, 0
        %v980 = vsel %vm778, %v754, 0
        %v983 = vsel %vm827, %v774, 0
        %985 = vmatprep.subr.mxu0 0.0
        %986 = vmatpush1.msra.mxu0 %v773
        %987 = vmatprep.subr.mxu0 0.0
        %988 = vmatpush1.msra.mxu0 %v983
        %989 = vmatprep.subr.mxu0 0.0
        %990 = vmatpush1.msra.mxu0 0.0
        %991 = vmatprep.subr.mxu0 0.0
        %992 = vmatpush1.msra.mxu0 0.0
        %993 = vmatprep.subr.mxu0 0.0
        %994 = vmatpush1.msra.mxu0 0.0
        %995 = vmatprep.subr.mxu0 0.0
        %996 = vmatpush1.msra.mxu0 0.0
        %997 = vmatprep.subr.mxu0 0.0
        %998 = vmatpush1.msra.mxu0 0.0
        %999 = vmatprep.subr.mxu0 0.0
        %1000 = vmatpush1.msra.mxu0 0.0
        %1001 = vmatprep.subr.mxu0 0.0
        %1002 = vmatpush1.msra.mxu0 0.0
        %1003 = vmatprep.subr.mxu0 0.0
        %1004 = vmatpush1.msra.mxu0 0.0
        %1005 = vmatprep.subr.mxu0 0.0
        %1006 = vmatpush1.msra.mxu0 0.0
        %1007 = vmatprep.subr.mxu0 0.0
        %1008 = vmatpush1.msra.mxu0 0.0
        %1009 = vmatprep.subr.mxu0 0.0
        %1010 = vmatpush1.msra.mxu0 0.0
        %1011 = vmatprep.subr.mxu0 0.0
        %1012 = vmatpush1.msra.mxu0 0.0
        %1013 = vmatprep.subr.mxu0 0.0
        %1014 = vmatpush1.msra.mxu0 0.0
        %1015 = vmatprep.subr.mxu0 0.0
        %1016 = vmatpush1.msra.mxu0 0.0
        %1017 = vmatprep.subr.mxu0 0.0
        %1018 = vmatpush1.msra.mxu0 0.0
        %1019 = vmatprep.subr.mxu0 0.0
        %1020 = vmatpush1.msra.mxu0 0.0
        %1021 = vmatprep.subr.mxu0 0.0
        %1022 = vmatpush1.msra.mxu0 0.0
        %1023 = vmatprep.subr.mxu0 0.0
        %1024 = vmatpush1.msra.mxu0 0.0
        %1025 = vmatprep.subr.mxu0 0.0
        %1026 = vmatpush1.msra.mxu0 0.0
        %1027 = vmatprep.subr.mxu0 0.0
        %1028 = vmatpush1.msra.mxu0 0.0
        %1029 = vmatprep.subr.mxu0 0.0
        %1030 = vmatpush1.msra.mxu0 0.0
        %1031 = vmatprep.subr.mxu0 0.0
        %1032 = vmatpush1.msra.mxu0 0.0
        %1033 = vmatprep.subr.mxu0 0.0
        %1034 = vmatpush1.msra.mxu0 0.0
        %1035 = vmatprep.subr.mxu0 0.0
        %1036 = vmatpush1.msra.mxu0 0.0
        %1037 = vmatprep.subr.mxu0 0.0
        %1038 = vmatpush1.msra.mxu0 0.0
        %1039 = vmatprep.subr.mxu0 0.0
        %1040 = vmatpush1.msra.mxu0 0.0
        %1041 = vmatprep.subr.mxu0 0.0
        %1042 = vmatpush1.msra.mxu0 0.0
        %1043 = vmatprep.subr.mxu0 0.0
        %1044 = vmatpush1.msra.mxu0 0.0
        %1045 = vmatprep.subr.mxu0 0.0
        %1046 = vmatpush1.msra.mxu0 0.0
        %1047 = vmatprep.subr.mxu0 0.0
        %1048 = vmatpush1.msra.mxu0 0.0
        %1049 = vmatprep.mubr.f32.mxu0 0.0
        %1050 = vmatmul.mubr.f32.gmra.mrb[0].mxu0 %v977
        %v1051 = vpop.f32.mrb[0].mxu0
        %v1052 = vadd.f32 %v898, %v1051
        %v1053 = vpop.f32.mrb[0].mxu0
        %1054 = vmatprep.mubr.f32.mxu0 0.0
        %1055 = vmatmul.mubr.f32.gmra.mrb[0].mxu0 %v980
        %v1056 = vpop.f32.mrb[0].mxu0
        %v1057 = vadd.f32 %v903, %v1056
        %v1058 = vpop.f32.mrb[0].mxu0
        %1059 = vmatprep.mubr.f32.mxu0 0.0
        %1060 = vmatmul.mubr.f32.gmra.mrb[0].mxu0 %v780
        %v1061 = vpop.f32.mrb[0].mxu0
        %v1062 = vadd.f32 %v908, %v1061
        %v1063 = vpop.f32.mrb[0].mxu0
        %1064 = vmatprep.mubr.f32.mxu0 0.0
        %1065 = vmatmul.mubr.f32.gmra.mrb[0].mxu0 %v783
        %v1066 = vpop.f32.mrb[0].mxu0
        %v1067 = vadd.f32 %v913, %v1066
        %v1068 = vpop.f32.mrb[0].mxu0
        %1069 = vmatprep.mubr.f32.mxu0 0.0
        %1070 = vmatmul.mubr.f32.gmra.mrb[0].mxu0 %v786
        %v1071 = vpop.f32.mrb[0].mxu0
        %v1072 = vadd.f32 %v918, %v1071
        %v1073 = vpop.f32.mrb[0].mxu0
        %1074 = vmatprep.mubr.f32.mxu0 0.0
        %1075 = vmatmul.mubr.f32.gmra.mrb[0].mxu0 %v789
        %v1076 = vpop.f32.mrb[0].mxu0
        %v1077 = vadd.f32 %v923, %v1076
        %v1078 = vpop.f32.mrb[0].mxu0
        %1079 = vmatprep.mubr.f32.mxu0 0.0
        %1080 = vmatmul.mubr.f32.gmra.mrb[0].mxu0 %v792
        %v1081 = vpop.f32.mrb[0].mxu0
        %v1082 = vadd.f32 %v928, %v1081
        %v1083 = vpop.f32.mrb[0].mxu0
        %1084 = vmatprep.mubr.f32.mxu0 0.0
        %1085 = vmatmul.mubr.f32.gmra.mrb[0].mxu0 %v795
        %v1086 = vpop.f32.mrb[0].mxu0
        %v1087 = vadd.f32 %v933, %v1086
        %v1088 = vpop.f32.mrb[0].mxu0
        %1089 = vmatprep.mubr.f32.mxu0 0.0
        %1090 = vmatmul.mubr.f32.gmra.mrb[0].mxu0 %v798
        %v1091 = vpop.f32.mrb[0].mxu0
        %v1092 = vadd.f32 %v938, %v1091
        %v1093 = vpop.f32.mrb[0].mxu0
        %1094 = vmatprep.mubr.f32.mxu0 0.0
        %1095 = vmatmul.mubr.f32.gmra.mrb[0].mxu0 %v801
        %v1096 = vpop.f32.mrb[0].mxu0
        %v1097 = vadd.f32 %v943, %v1096
        %v1098 = vpop.f32.mrb[0].mxu0
        %1099 = vmatprep.mubr.f32.mxu0 0.0
        %1100 = vmatmul.mubr.f32.gmra.mrb[0].mxu0 %v804
        %v1101 = vpop.f32.mrb[0].mxu0
        %v1102 = vadd.f32 %v948, %v1101
        %v1103 = vpop.f32.mrb[0].mxu0
        %1104 = vmatprep.mubr.f32.mxu0 0.0
        %1105 = vmatmul.mubr.f32.gmra.mrb[0].mxu0 %v807
        %v1106 = vpop.f32.mrb[0].mxu0
        %v1107 = vadd.f32 %v953, %v1106
        %v1108 = vpop.f32.mrb[0].mxu0
        %1109 = vmatprep.mubr.f32.mxu0 0.0
        %1110 = vmatmul.mubr.f32.gmra.mrb[0].mxu0 %v810
        %v1111 = vpop.f32.mrb[0].mxu0
        %v1112 = vadd.f32 %v958, %v1111
        %v1113 = vpop.f32.mrb[0].mxu0
        %1114 = vmatprep.mubr.f32.mxu0 0.0
        %1115 = vmatmul.mubr.f32.gmra.mrb[0].mxu0 %v813
        %v1116 = vpop.f32.mrb[0].mxu0
        %v1117 = vadd.f32 %v963, %v1116
        %v1118 = vpop.f32.mrb[0].mxu0
        %1119 = vmatprep.mubr.f32.mxu0 0.0
        %1120 = vmatmul.mubr.f32.gmra.mrb[0].mxu0 %v816
        %v1121 = vpop.f32.mrb[0].mxu0
        %v1122 = vadd.f32 %v968, %v1121
        %v1123 = vpop.f32.mrb[0].mxu0
        %1124 = vmatprep.mubr.f32.mxu0 0.0
        %1125 = vmatmul.mubr.f32.gmra.mrb[0].mxu0 %v819
        %v1126 = vpop.f32.mrb[0].mxu0
        %v1127 = vadd.f32 %v973, %v1126
        %v1128 = vpop.f32.mrb[0].mxu0
        %1129 = vdwg.mxu0
        %s1130 = scalar_lea.vmem [#allocation8], 32
        %v1131 = vld [vmem:[%s1130] sm:$0xff]
        %v1132 = vld [vmem:[%s1130 + $0x8] sm:$0xf]
        %v1134 = vsel %vm778, %v771, 0
        %v1137 = vsel %vm778, %v772, 0
        %v1140 = vsel %vm827, %v1132, 0
        %1142 = vmatprep.subr.mxu0 0.0
        %1143 = vmatpush1.msra.mxu0 %v1131
        %1144 = vmatprep.subr.mxu0 0.0
        %1145 = vmatpush1.msra.mxu0 %v1140
        %1146 = vmatprep.subr.mxu0 0.0
        %1147 = vmatpush1.msra.mxu0 0.0
        %1148 = vmatprep.subr.mxu0 0.0
        %1149 = vmatpush1.msra.mxu0 0.0
        %1150 = vmatprep.subr.mxu0 0.0
        %1151 = vmatpush1.msra.mxu0 0.0
        %1152 = vmatprep.subr.mxu0 0.0
        %1153 = vmatpush1.msra.mxu0 0.0
        %1154 = vmatprep.subr.mxu0 0.0
        %1155 = vmatpush1.msra.mxu0 0.0
        %1156 = vmatprep.subr.mxu0 0.0
        %1157 = vmatpush1.msra.mxu0 0.0
        %1158 = vmatprep.subr.mxu0 0.0
        %1159 = vmatpush1.msra.mxu0 0.0
        %1160 = vmatprep.subr.mxu0 0.0
        %1161 = vmatpush1.msra.mxu0 0.0
        %1162 = vmatprep.subr.mxu0 0.0
        %1163 = vmatpush1.msra.mxu0 0.0
        %1164 = vmatprep.subr.mxu0 0.0
        %1165 = vmatpush1.msra.mxu0 0.0
        %1166 = vmatprep.subr.mxu0 0.0
        %1167 = vmatpush1.msra.mxu0 0.0
        %1168 = vmatprep.subr.mxu0 0.0
        %1169 = vmatpush1.msra.mxu0 0.0
        %1170 = vmatprep.subr.mxu0 0.0
        %1171 = vmatpush1.msra.mxu0 0.0
        %1172 = vmatprep.subr.mxu0 0.0
        %1173 = vmatpush1.msra.mxu0 0.0
        %1174 = vmatprep.subr.mxu0 0.0
        %1175 = vmatpush1.msra.mxu0 0.0
        %1176 = vmatprep.subr.mxu0 0.0
        %1177 = vmatpush1.msra.mxu0 0.0
        %1178 = vmatprep.subr.mxu0 0.0
        %1179 = vmatpush1.msra.mxu0 0.0
        %1180 = vmatprep.subr.mxu0 0.0
        %1181 = vmatpush1.msra.mxu0 0.0
        %1182 = vmatprep.subr.mxu0 0.0
        %1183 = vmatpush1.msra.mxu0 0.0
        %1184 = vmatprep.subr.mxu0 0.0
        %1185 = vmatpush1.msra.mxu0 0.0
        %1186 = vmatprep.subr.mxu0 0.0
        %1187 = vmatpush1.msra.mxu0 0.0
        %1188 = vmatprep.subr.mxu0 0.0
        %1189 = vmatpush1.msra.mxu0 0.0
        %1190 = vmatprep.subr.mxu0 0.0
        %1191 = vmatpush1.msra.mxu0 0.0
        %1192 = vmatprep.subr.mxu0 0.0
        %1193 = vmatpush1.msra.mxu0 0.0
        %1194 = vmatprep.subr.mxu0 0.0
        %1195 = vmatpush1.msra.mxu0 0.0
        %1196 = vmatprep.subr.mxu0 0.0
        %1197 = vmatpush1.msra.mxu0 0.0
        %1198 = vmatprep.subr.mxu0 0.0
        %1199 = vmatpush1.msra.mxu0 0.0
        %1200 = vmatprep.subr.mxu0 0.0
        %1201 = vmatpush1.msra.mxu0 0.0
        %1202 = vmatprep.subr.mxu0 0.0
        %1203 = vmatpush1.msra.mxu0 0.0
        %1204 = vmatprep.subr.mxu0 0.0
        %1205 = vmatpush1.msra.mxu0 0.0
        %1206 = vmatprep.mubr.f32.mxu0 0.0
        %1207 = vmatmul.mubr.f32.gmra.mrb[0].mxu0 %v786
        %v1208 = vpop.f32.mrb[0].mxu0
        %v1209 = vadd.f32 0.0, %v1208
        %v1210 = vpop.f32.mrb[0].mxu0
        %1211 = vmatprep.mubr.f32.mxu0 0.0
        %1212 = vmatmul.mubr.f32.gmra.mrb[0].mxu0 %v789
        %v1213 = vpop.f32.mrb[0].mxu0
        %v1214 = vadd.f32 0.0, %v1213
        %v1215 = vpop.f32.mrb[0].mxu0
        %1216 = vmatprep.mubr.f32.mxu0 0.0
        %1217 = vmatmul.mubr.f32.gmra.mrb[0].mxu0 %v792
        %v1218 = vpop.f32.mrb[0].mxu0
        %v1219 = vadd.f32 0.0, %v1218
        %v1220 = vpop.f32.mrb[0].mxu0
        %1221 = vmatprep.mubr.f32.mxu0 0.0
        %1222 = vmatmul.mubr.f32.gmra.mrb[0].mxu0 %v795
        %v1223 = vpop.f32.mrb[0].mxu0
        %v1224 = vadd.f32 0.0, %v1223
        %v1225 = vpop.f32.mrb[0].mxu0
        %1226 = vmatprep.mubr.f32.mxu0 0.0
        %1227 = vmatmul.mubr.f32.gmra.mrb[0].mxu0 %v798
        %v1228 = vpop.f32.mrb[0].mxu0
        %v1229 = vadd.f32 0.0, %v1228
        %v1230 = vpop.f32.mrb[0].mxu0
        %1231 = vmatprep.mubr.f32.mxu0 0.0
        %1232 = vmatmul.mubr.f32.gmra.mrb[0].mxu0 %v801
        %v1233 = vpop.f32.mrb[0].mxu0
        %v1234 = vadd.f32 0.0, %v1233
        %v1235 = vpop.f32.mrb[0].mxu0
        %1236 = vmatprep.mubr.f32.mxu0 0.0
        %1237 = vmatmul.mubr.f32.gmra.mrb[0].mxu0 %v804
        %v1238 = vpop.f32.mrb[0].mxu0
        %v1239 = vadd.f32 0.0, %v1238
        %v1240 = vpop.f32.mrb[0].mxu0
        %1241 = vmatprep.mubr.f32.mxu0 0.0
        %1242 = vmatmul.mubr.f32.gmra.mrb[0].mxu0 %v807
        %v1243 = vpop.f32.mrb[0].mxu0
        %v1244 = vadd.f32 0.0, %v1243
        %v1245 = vpop.f32.mrb[0].mxu0
        %1246 = vmatprep.mubr.f32.mxu0 0.0
        %1247 = vmatmul.mubr.f32.gmra.mrb[0].mxu0 %v810
        %v1248 = vpop.f32.mrb[0].mxu0
        %v1249 = vadd.f32 0.0, %v1248
        %v1250 = vpop.f32.mrb[0].mxu0
        %1251 = vmatprep.mubr.f32.mxu0 0.0
        %1252 = vmatmul.mubr.f32.gmra.mrb[0].mxu0 %v813
        %v1253 = vpop.f32.mrb[0].mxu0
        %v1254 = vadd.f32 0.0, %v1253
        %v1255 = vpop.f32.mrb[0].mxu0
        %1256 = vmatprep.mubr.f32.mxu0 0.0
        %1257 = vmatmul.mubr.f32.gmra.mrb[0].mxu0 %v816
        %v1258 = vpop.f32.mrb[0].mxu0
        %v1259 = vadd.f32 0.0, %v1258
        %v1260 = vpop.f32.mrb[0].mxu0
        %1261 = vmatprep.mubr.f32.mxu0 0.0
        %1262 = vmatmul.mubr.f32.gmra.mrb[0].mxu0 %v819
        %v1263 = vpop.f32.mrb[0].mxu0
        %v1264 = vadd.f32 0.0, %v1263
        %v1265 = vpop.f32.mrb[0].mxu0
        %1266 = vmatprep.mubr.f32.mxu0 0.0
        %1267 = vmatmul.mubr.f32.gmra.mrb[0].mxu0 %v822
        %v1268 = vpop.f32.mrb[0].mxu0
        %v1269 = vadd.f32 0.0, %v1268
        %v1270 = vpop.f32.mrb[0].mxu0
        %1271 = vmatprep.mubr.f32.mxu0 0.0
        %1272 = vmatmul.mubr.f32.gmra.mrb[0].mxu0 %v825
        %v1273 = vpop.f32.mrb[0].mxu0
        %v1274 = vadd.f32 0.0, %v1273
        %v1275 = vpop.f32.mrb[0].mxu0
        %1276 = vmatprep.mubr.f32.mxu0 0.0
        %1277 = vmatmul.mubr.f32.gmra.mrb[0].mxu0 %v1134
        %v1278 = vpop.f32.mrb[0].mxu0
        %v1279 = vadd.f32 0.0, %v1278
        %v1280 = vpop.f32.mrb[0].mxu0
        %1281 = vmatprep.mubr.f32.mxu0 0.0
        %1282 = vmatmul.mubr.f32.gmra.mrb[0].mxu0 %v1137
        %v1283 = vpop.f32.mrb[0].mxu0
        %v1284 = vadd.f32 0.0, %v1283
        %v1285 = vpop.f32.mrb[0].mxu0
        %1286 = vdwg.mxu0
        %v1287 = vadd.f32 %v1052, %v1209
        %v1288 = vadd.f32 %v1057, %v1214
        %v1289 = vadd.f32 %v1062, %v1219
        %v1290 = vadd.f32 %v1067, %v1224
        %v1291 = vadd.f32 %v1072, %v1229
        %v1292 = vadd.f32 %v1077, %v1234
        %v1293 = vadd.f32 %v1082, %v1239
        %v1294 = vadd.f32 %v1087, %v1244
        %v1295 = vadd.f32 %v1092, %v1249
        %v1296 = vadd.f32 %v1097, %v1254
        %v1297 = vadd.f32 %v1102, %v1259
        %v1298 = vadd.f32 %v1107, %v1264
        %v1299 = vadd.f32 %v1112, %v1269
        %v1300 = vadd.f32 %v1117, %v1274
        %v1301 = vadd.f32 %v1122, %v1279
        %v1302 = vadd.f32 %v1127, %v1284
        %v1303 = vld [vmem:[#allocation10] sm:$0x1]
        %v1305 = vlaneseq
        %v1306 = vshrl.u32 %v1305, 7
        %v1307 = vsub.s32 0, %v1306
        %v1308 = vrot.slane %v1303, %v1307
        %v1310 = vadd.f32 %v1287, %v1308
        %v1311 = vadd.f32 %v1288, %v1308
        %v1312 = vadd.f32 %v1289, %v1308
        %v1313 = vadd.f32 %v1290, %v1308
        %v1314 = vadd.f32 %v1291, %v1308
        %v1315 = vadd.f32 %v1292, %v1308
        %v1316 = vadd.f32 %v1293, %v1308
        %v1317 = vadd.f32 %v1294, %v1308
        %v1318 = vadd.f32 %v1295, %v1308
        %v1319 = vadd.f32 %v1296, %v1308
        %v1320 = vadd.f32 %v1297, %v1308
        %v1321 = vadd.f32 %v1298, %v1308
        %v1322 = vadd.f32 %v1299, %v1308
        %v1323 = vadd.f32 %v1300, %v1308
        %v1324 = vadd.f32 %v1301, %v1308
        %v1325 = vadd.f32 %v1302, %v1308
        %vm1326 = vcmp.gt.f32.partialorder %v1310, 0.0
        %vm1327 = vcmp.gt.f32.partialorder %v1311, 0.0
        %vm1328 = vcmp.gt.f32.partialorder %v1312, 0.0
        %vm1329 = vcmp.gt.f32.partialorder %v1313, 0.0
        %vm1330 = vcmp.gt.f32.partialorder %v1314, 0.0
        %vm1331 = vcmp.gt.f32.partialorder %v1315, 0.0
        %vm1332 = vcmp.gt.f32.partialorder %v1316, 0.0
        %vm1333 = vcmp.gt.f32.partialorder %v1317, 0.0
        %vm1334 = vcmp.gt.f32.partialorder %v1318, 0.0
        %vm1335 = vcmp.gt.f32.partialorder %v1319, 0.0
        %vm1336 = vcmp.gt.f32.partialorder %v1320, 0.0
        %vm1337 = vcmp.gt.f32.partialorder %v1321, 0.0
        %vm1338 = vcmp.gt.f32.partialorder %v1322, 0.0
        %vm1339 = vcmp.gt.f32.partialorder %v1323, 0.0
        %vm1340 = vcmp.gt.f32.partialorder %v1324, 0.0
        %vm1341 = vcmp.gt.f32.partialorder %v1325, 0.0
        %v1342 = vmin.f32 %v1310, 0.0
        %v1343 = vmin.f32 %v1311, 0.0
        %v1344 = vmin.f32 %v1312, 0.0
        %v1345 = vmin.f32 %v1313, 0.0
        %v1346 = vmin.f32 %v1314, 0.0
        %v1347 = vmin.f32 %v1315, 0.0
        %v1348 = vmin.f32 %v1316, 0.0
        %v1349 = vmin.f32 %v1317, 0.0
        %v1350 = vmin.f32 %v1318, 0.0
        %v1351 = vmin.f32 %v1319, 0.0
        %v1352 = vmin.f32 %v1320, 0.0
        %v1353 = vmin.f32 %v1321, 0.0
        %v1354 = vmin.f32 %v1322, 0.0
        %v1355 = vmin.f32 %v1323, 0.0
        %v1356 = vmin.f32 %v1324, 0.0
        %v1357 = vmin.f32 %v1325, 0.0
        %v1358 = vmul.f32 %v1342, 1.442695
        %v1359 = vpow.pop %v1358
        %v1360 = vmul.f32 %v1343, 1.442695
        %v1361 = vpow.pop %v1360
        %v1362 = vmul.f32 %v1344, 1.442695
        %v1363 = vpow.pop %v1362
        %v1364 = vmul.f32 %v1345, 1.442695
        %v1365 = vpow.pop %v1364
        %v1366 = vmul.f32 %v1346, 1.442695
        %v1367 = vpow.pop %v1366
        %v1368 = vmul.f32 %v1347, 1.442695
        %v1369 = vpow.pop %v1368
        %v1370 = vmul.f32 %v1348, 1.442695
        %v1371 = vpow.pop %v1370
        %v1372 = vmul.f32 %v1349, 1.442695
        %v1373 = vpow.pop %v1372
        %v1374 = vmul.f32 %v1350, 1.442695
        %v1375 = vpow.pop %v1374
        %v1376 = vmul.f32 %v1351, 1.442695
        %v1377 = vpow.pop %v1376
        %v1378 = vmul.f32 %v1352, 1.442695
        %v1379 = vpow.pop %v1378
        %v1380 = vmul.f32 %v1353, 1.442695
        %v1381 = vpow.pop %v1380
        %v1382 = vmul.f32 %v1354, 1.442695
        %v1383 = vpow.pop %v1382
        %v1384 = vmul.f32 %v1355, 1.442695
        %v1385 = vpow.pop %v1384
        %v1386 = vmul.f32 %v1356, 1.442695
        %v1387 = vpow.pop %v1386
        %v1388 = vmul.f32 %v1357, 1.442695
        %v1389 = vpow.pop %v1388
        %v1390 = vsub.f32 %v1359, 1.0
        %v1391 = vsub.f32 %v1361, 1.0
        %v1392 = vsub.f32 %v1363, 1.0
        %v1393 = vsub.f32 %v1365, 1.0
        %v1394 = vsub.f32 %v1367, 1.0
        %v1395 = vsub.f32 %v1369, 1.0
        %v1396 = vsub.f32 %v1371, 1.0
        %v1397 = vsub.f32 %v1373, 1.0
        %v1398 = vsub.f32 %v1375, 1.0
        %v1399 = vsub.f32 %v1377, 1.0
        %v1400 = vsub.f32 %v1379, 1.0
        %v1401 = vsub.f32 %v1381, 1.0
        %v1402 = vsub.f32 %v1383, 1.0
        %v1403 = vsub.f32 %v1385, 1.0
        %v1404 = vsub.f32 %v1387, 1.0
        %v1405 = vsub.f32 %v1389, 1.0
        %v1406 = vsel %vm1326, %v1310, %v1390
        %v1407 = vsel %vm1327, %v1311, %v1391
        %v1408 = vsel %vm1328, %v1312, %v1392
        %v1409 = vsel %vm1329, %v1313, %v1393
        %v1410 = vsel %vm1330, %v1314, %v1394
        %v1411 = vsel %vm1331, %v1315, %v1395
        %v1412 = vsel %vm1332, %v1316, %v1396
        %v1413 = vsel %vm1333, %v1317, %v1397
        %v1414 = vsel %vm1334, %v1318, %v1398
        %v1415 = vsel %vm1335, %v1319, %v1399
        %v1416 = vsel %vm1336, %v1320, %v1400
        %v1417 = vsel %vm1337, %v1321, %v1401
        %v1418 = vsel %vm1338, %v1322, %v1402
        %v1419 = vsel %vm1339, %v1323, %v1403
        %v1420 = vsel %vm1340, %v1324, %v1404
        %v1421 = vsel %vm1341, %v1325, %v1405
        %v1422 = vsub.f32 0.0, %v1310
        %v1423 = vsub.f32 0.0, %v1311
        %v1424 = vsub.f32 0.0, %v1312
        %v1425 = vsub.f32 0.0, %v1313
        %v1426 = vsub.f32 0.0, %v1314
        %v1427 = vsub.f32 0.0, %v1315
        %v1428 = vsub.f32 0.0, %v1316
        %v1429 = vsub.f32 0.0, %v1317
        %v1430 = vsub.f32 0.0, %v1318
        %v1431 = vsub.f32 0.0, %v1319
        %v1432 = vsub.f32 0.0, %v1320
        %v1433 = vsub.f32 0.0, %v1321
        %v1434 = vsub.f32 0.0, %v1322
        %v1435 = vsub.f32 0.0, %v1323
        %v1436 = vsub.f32 0.0, %v1324
        %v1437 = vsub.f32 0.0, %v1325
        %v1438 = vmul.f32 %v1422, 1.442695
        %v1439 = vpow.pop %v1438
        %v1440 = vmul.f32 %v1423, 1.442695
        %v1441 = vpow.pop %v1440
        %v1442 = vmul.f32 %v1424, 1.442695
        %v1443 = vpow.pop %v1442
        %v1444 = vmul.f32 %v1425, 1.442695
        %v1445 = vpow.pop %v1444
        %v1446 = vmul.f32 %v1426, 1.442695
        %v1447 = vpow.pop %v1446
        %v1448 = vmul.f32 %v1427, 1.442695
        %v1449 = vpow.pop %v1448
        %v1450 = vmul.f32 %v1428, 1.442695
        %v1451 = vpow.pop %v1450
        %v1452 = vmul.f32 %v1429, 1.442695
        %v1453 = vpow.pop %v1452
        %v1454 = vmul.f32 %v1430, 1.442695
        %v1455 = vpow.pop %v1454
        %v1456 = vmul.f32 %v1431, 1.442695
        %v1457 = vpow.pop %v1456
        %v1458 = vmul.f32 %v1432, 1.442695
        %v1459 = vpow.pop %v1458
        %v1460 = vmul.f32 %v1433, 1.442695
        %v1461 = vpow.pop %v1460
        %v1462 = vmul.f32 %v1434, 1.442695
        %v1463 = vpow.pop %v1462
        %v1464 = vmul.f32 %v1435, 1.442695
        %v1465 = vpow.pop %v1464
        %v1466 = vmul.f32 %v1436, 1.442695
        %v1467 = vpow.pop %v1466
        %v1468 = vmul.f32 %v1437, 1.442695
        %v1469 = vpow.pop %v1468
        %v1470 = vadd.f32 %v1439, 1.0
        %v1471 = vadd.f32 %v1441, 1.0
        %v1472 = vadd.f32 %v1443, 1.0
        %v1473 = vadd.f32 %v1445, 1.0
        %v1474 = vadd.f32 %v1447, 1.0
        %v1475 = vadd.f32 %v1449, 1.0
        %v1476 = vadd.f32 %v1451, 1.0
        %v1477 = vadd.f32 %v1453, 1.0
        %v1478 = vadd.f32 %v1455, 1.0
        %v1479 = vadd.f32 %v1457, 1.0
        %v1480 = vadd.f32 %v1459, 1.0
        %v1481 = vadd.f32 %v1461, 1.0
        %v1482 = vadd.f32 %v1463, 1.0
        %v1483 = vadd.f32 %v1465, 1.0
        %v1484 = vadd.f32 %v1467, 1.0
        %v1485 = vadd.f32 %v1469, 1.0
        %v1486 = vrcp.pop %v1470
        %v1487 = vrcp.pop %v1471
        %v1488 = vrcp.pop %v1472
        %v1489 = vrcp.pop %v1473
        %v1490 = vrcp.pop %v1474
        %v1491 = vrcp.pop %v1475
        %v1492 = vrcp.pop %v1476
        %v1493 = vrcp.pop %v1477
        %v1494 = vrcp.pop %v1478
        %v1495 = vrcp.pop %v1479
        %v1496 = vrcp.pop %v1480
        %v1497 = vrcp.pop %v1481
        %v1498 = vrcp.pop %v1482
        %v1499 = vrcp.pop %v1483
        %v1500 = vrcp.pop %v1484
        %v1501 = vrcp.pop %v1485
        %1518 = vrot.lane.b32.xlu0 %v1486, 120
        %v1519 = vpop.permute.xlu0 %1518
        %1520 = vrot.lane.b32.xlu0 %v1487, 120
        %v1521 = vpop.permute.xlu0 %1520
        %1522 = vrot.lane.b32.xlu0 %v1488, 120
        %v1523 = vpop.permute.xlu0 %1522
        %1524 = vrot.lane.b32.xlu0 %v1489, 120
        %v1525 = vpop.permute.xlu0 %1524
        %1526 = vrot.lane.b32.xlu0 %v1490, 120
        %v1527 = vpop.permute.xlu0 %1526
        %1528 = vrot.lane.b32.xlu0 %v1491, 120
        %v1529 = vpop.permute.xlu0 %1528
        %1530 = vrot.lane.b32.xlu0 %v1492, 120
        %v1531 = vpop.permute.xlu0 %1530
        %1532 = vrot.lane.b32.xlu0 %v1493, 120
        %v1533 = vpop.permute.xlu0 %1532
        %1534 = vrot.lane.b32.xlu0 %v1494, 120
        %v1535 = vpop.permute.xlu0 %1534
        %1536 = vrot.lane.b32.xlu0 %v1495, 120
        %v1537 = vpop.permute.xlu0 %1536
        %1538 = vrot.lane.b32.xlu0 %v1496, 120
        %v1539 = vpop.permute.xlu0 %1538
        %1540 = vrot.lane.b32.xlu0 %v1497, 120
        %v1541 = vpop.permute.xlu0 %1540
        %1542 = vrot.lane.b32.xlu0 %v1498, 120
        %v1543 = vpop.permute.xlu0 %1542
        %1544 = vrot.lane.b32.xlu0 %v1499, 120
        %v1545 = vpop.permute.xlu0 %1544
        %1546 = vrot.lane.b32.xlu0 %v1500, 120
        %v1547 = vpop.permute.xlu0 %1546
        %1548 = vrot.lane.b32.xlu0 %v1501, 120
        %v1549 = vpop.permute.xlu0 %1548
        %v1566 = vmul.f32 %v1406, %v1519
        %v1567 = vmul.f32 %v1407, %v1521
        %v1568 = vmul.f32 %v1408, %v1523
        %v1569 = vmul.f32 %v1409, %v1525
        %v1570 = vmul.f32 %v1410, %v1527
        %v1571 = vmul.f32 %v1411, %v1529
        %v1572 = vmul.f32 %v1412, %v1531
        %v1573 = vmul.f32 %v1413, %v1533
        %v1574 = vmul.f32 %v1414, %v1535
        %v1575 = vmul.f32 %v1415, %v1537
        %v1576 = vmul.f32 %v1416, %v1539
        %v1577 = vmul.f32 %v1417, %v1541
        %v1578 = vmul.f32 %v1418, %v1543
        %v1579 = vmul.f32 %v1419, %v1545
        %v1580 = vmul.f32 %v1420, %v1547
        %v1581 = vmul.f32 %v1421, %v1549
        %1582 = vst.msk [vmem:[%s429] sm:$0xff] %vm752, %v1566
        %1583 = vst.msk [vmem:[%s429 + $0x8] sm:$0xff] %vm752, %v1567
        %1584 = vst.msk [vmem:[%s429 + $0x10] sm:$0xff] %vm752, %v1568
        %1585 = vst.msk [vmem:[%s429 + $0x18] sm:$0xff] %vm752, %v1569
        %1586 = vst.msk [vmem:[%s429 + $0x20] sm:$0xff] %vm752, %v1570
        %1587 = vst.msk [vmem:[%s429 + $0x28] sm:$0xff] %vm752, %v1571
        %1588 = vst.msk [vmem:[%s429 + $0x30] sm:$0xff] %vm752, %v1572
        %1589 = vst.msk [vmem:[%s429 + $0x38] sm:$0xff] %vm752, %v1573
        %1590 = vst.msk [vmem:[%s429 + $0x40] sm:$0xff] %vm752, %v1574
        %1591 = vst.msk [vmem:[%s429 + $0x48] sm:$0xff] %vm752, %v1575
        %1592 = vst.msk [vmem:[%s429 + $0x50] sm:$0xff] %vm752, %v1576
        %1593 = vst.msk [vmem:[%s429 + $0x58] sm:$0xff] %vm752, %v1577
        %1594 = vst.msk [vmem:[%s429 + $0x60] sm:$0xff] %vm752, %v1578
        %1595 = vst.msk [vmem:[%s429 + $0x68] sm:$0xff] %vm752, %v1579
        %1596 = vst.msk [vmem:[%s429 + $0x70] sm:$0xff] %vm752, %v1580
        %1597 = vst.msk [vmem:[%s429 + $0x78] sm:$0xff] %vm752, %v1581
        %v1598 = vsel %vm752, %v1566, 0.0
        %v1599 = vsel %vm752, %v1567, 0.0
        %v1600 = vadd.f32 %v1598, %v1599
        %v1601 = vsel %vm752, %v1568, 0.0
        %v1602 = vadd.f32 %v1600, %v1601
        %v1603 = vsel %vm752, %v1569, 0.0
        %v1604 = vadd.f32 %v1602, %v1603
        %v1605 = vsel %vm752, %v1570, 0.0
        %v1606 = vadd.f32 %v1604, %v1605
        %v1607 = vsel %vm752, %v1571, 0.0
        %v1608 = vadd.f32 %v1606, %v1607
        %v1609 = vsel %vm752, %v1572, 0.0
        %v1610 = vadd.f32 %v1608, %v1609
        %v1611 = vsel %vm752, %v1573, 0.0
        %v1612 = vadd.f32 %v1610, %v1611
        %v1613 = vsel %vm752, %v1574, 0.0
        %v1614 = vadd.f32 %v1612, %v1613
        %v1615 = vsel %vm752, %v1575, 0.0
        %v1616 = vadd.f32 %v1614, %v1615
        %v1617 = vsel %vm752, %v1576, 0.0
        %v1618 = vadd.f32 %v1616, %v1617
        %v1619 = vsel %vm752, %v1577, 0.0
        %v1620 = vadd.f32 %v1618, %v1619
        %v1621 = vsel %vm752, %v1578, 0.0
        %v1622 = vadd.f32 %v1620, %v1621
        %v1623 = vsel %vm752, %v1579, 0.0
        %v1624 = vadd.f32 %v1622, %v1623
        %v1625 = vsel %vm752, %v1580, 0.0
        %v1626 = vadd.f32 %v1624, %v1625
        %v1627 = vsel %vm752, %v1581, 0.0
        %v1628 = vadd.f32 %v1626, %v1627
        %v1629 = vrot.slane %v1628, 4
        %v1630 = vadd.f32 %v1628, %v1629
        %v1631 = vrot.slane %v1630, 2
        %v1632 = vadd.f32 %v1630, %v1631
        %v1633 = vrot.slane %v1632, 1
        %v1634 = vadd.f32 %v1632, %v1633
        %v1635 = vmul.f32 %v1566, %v1566
        %v1636 = vmul.f32 %v1567, %v1567
        %v1637 = vmul.f32 %v1568, %v1568
        %v1638 = vmul.f32 %v1569, %v1569
        %v1639 = vmul.f32 %v1570, %v1570
        %v1640 = vmul.f32 %v1571, %v1571
        %v1641 = vmul.f32 %v1572, %v1572
        %v1642 = vmul.f32 %v1573, %v1573
        %v1643 = vmul.f32 %v1574, %v1574
        %v1644 = vmul.f32 %v1575, %v1575
        %v1645 = vmul.f32 %v1576, %v1576
        %v1646 = vmul.f32 %v1577, %v1577
        %v1647 = vmul.f32 %v1578, %v1578
        %v1648 = vmul.f32 %v1579, %v1579
        %v1649 = vmul.f32 %v1580, %v1580
        %v1650 = vmul.f32 %v1581, %v1581
        %v1651 = vsel %vm752, %v1635, 0.0
        %v1652 = vsel %vm752, %v1636, 0.0
        %v1653 = vadd.f32 %v1651, %v1652
        %v1654 = vsel %vm752, %v1637, 0.0
        %v1655 = vadd.f32 %v1653, %v1654
        %v1656 = vsel %vm752, %v1638, 0.0
        %v1657 = vadd.f32 %v1655, %v1656
        %v1658 = vsel %vm752, %v1639, 0.0
        %v1659 = vadd.f32 %v1657, %v1658
        %v1660 = vsel %vm752, %v1640, 0.0
        %v1661 = vadd.f32 %v1659, %v1660
        %v1662 = vsel %vm752, %v1641, 0.0
        %v1663 = vadd.f32 %v1661, %v1662
        %v1664 = vsel %vm752, %v1642, 0.0
        %v1665 = vadd.f32 %v1663, %v1664
        %v1666 = vsel %vm752, %v1643, 0.0
        %v1667 = vadd.f32 %v1665, %v1666
        %v1668 = vsel %vm752, %v1644, 0.0
        %v1669 = vadd.f32 %v1667, %v1668
        %v1670 = vsel %vm752, %v1645, 0.0
        %v1671 = vadd.f32 %v1669, %v1670
        %v1672 = vsel %vm752, %v1646, 0.0
        %v1673 = vadd.f32 %v1671, %v1672
        %v1674 = vsel %vm752, %v1647, 0.0
        %v1675 = vadd.f32 %v1673, %v1674
        %v1676 = vsel %vm752, %v1648, 0.0
        %v1677 = vadd.f32 %v1675, %v1676
        %v1678 = vsel %vm752, %v1649, 0.0
        %v1679 = vadd.f32 %v1677, %v1678
        %v1680 = vsel %vm752, %v1650, 0.0
        %v1681 = vadd.f32 %v1679, %v1680
        %v1682 = vrot.slane %v1681, 4
        %v1683 = vadd.f32 %v1681, %v1682
        %v1684 = vrot.slane %v1683, 2
        %v1685 = vadd.f32 %v1683, %v1684
        %v1686 = vrot.slane %v1685, 1
        %v1687 = vadd.f32 %v1685, %v1686
        %vm1688 = vcmask 1040384
        %v1689 = vsel %vm1688, %v1634, %v1687
        %vm1690 = vcmask 58368
        %1691 = vst.msk [vmem:[%s436] sm:$0x3] %vm1690, %v1689
        %s1692 = sand.u32 %s189, 1
        %s1693 = scalar_lea.sflag [#allocation4], %s1692
        %s1694 = sand.u32 %s189, 1
        %s1695 = smul.addr %s1694, 128
        %s1696 = scalar_lea.vmem [#allocation11], %s1695
        %s1697 = sand.u32 %s217, 1
        %s1698 = scalar_lea.sflag [#allocation13], %s1697
        %s1699 = sand.u32 %s217, 1
        %s1700 = smul.addr %s1699, 2
        %s1701 = scalar_lea.vmem [#allocation12], %s1700
        // Predicated region
        $region61: #{tpu_custom_call.1} parent=39 // pred_check
          %p1702 = pneg %p199
        $region62: #{tpu_custom_call.1} parent=39 // pred_check_branch
          %1704 = sbr.rel (%p1702) target = $region64
        $region63: #{tpu_custom_call.1} parent=39 // pred_region
          %s1705 = smul.u32 16, %s36
          %s1707 = ssub.s32 2048, 2048
          %1708 = vsyncadd %s1693, %s1707
          %s1709 = smul.addr %s35, 32
          %s1710 = sadd.s32 %s1705, %s1709
          %s1711 = smul.addr %s1710, 128
          %s1712 = scalar_lea.hbm %s5, %s1711
          %s1713 = sshll.u32 %s1696, 4
          %s1714 = int_to_ptr.vmem [resolvable:$true] %s1713
          %1719 = dma.vmem_to_hbm [thread:$0]  %s1714, 2048, %s1712, %s1693, 128, 128, 8
        $region64: #{tpu_custom_call.1} parent=39 // pred_fallthru
          _
        // Predicated region
        $region65: #{tpu_custom_call.1} parent=39 // pred_check
          %p1720 = pneg %p227
        $region66: #{tpu_custom_call.1} parent=39 // pred_check_branch
          %1722 = sbr.rel (%p1720) target = $region68
        $region67: #{tpu_custom_call.1} parent=39 // pred_region
          %s1724 = ssub.s32 32, 32
          %1725 = vsyncadd %s1698, %s1724
          %s1726 = smul.addr %s35, 2
          %s1727 = sadd.s32 %s36, %s1726
          %s1728 = smul.addr %s1727, 32
          %s1729 = scalar_lea.hbm %s6, %s1728
          %s1731 = sshll.u32 %s1701, 4
          %s1732 = int_to_ptr.vmem [resolvable:$true] %s1731
          %1734 = dma.vmem_to_hbm [thread:$0]  %s1732, 32, %s1729, %s1698
        $region68: #{tpu_custom_call.1} parent=39 // pred_fallthru
          _
      $region40: #{tpu_custom_call.1} parent=5 // pred_fallthru
        _
      %p1735 = scmp.le.s32.totalorder 2, %s26
      // Predicated region
      $region69: #{tpu_custom_call.1} parent=5 // pred_check
        %p1736 = pneg %p1735
      $region70: #{tpu_custom_call.1} parent=5 // pred_check_branch
        %1738 = sbr.rel (%p1736) target = $region72
      $region71: #{tpu_custom_call.1} parent=5 // pred_region
        %s1739 = ssub.s32 %s26, 2
        // Predicated region
        $region73: #{tpu_custom_call.1} parent=71 // pred_check
          %p1740 = pneg %p205
        $region74: #{tpu_custom_call.1} parent=71 // pred_check_branch
          %1742 = sbr.rel (%p1740) target = $region76
        $region75: #{tpu_custom_call.1} parent=71 // pred_region
          %s1743 = sand.u32 %s190, 1
          %s1744 = scalar_lea.sflag [#allocation4], %s1743
          %s1745 = sand.u32 %s190, 1
          %s1746 = smul.addr %s1745, 128
          %s1747 = scalar_lea.vmem [#allocation11], %s1746
          %1748 = dma.done %s1744, 2048
        $region76: #{tpu_custom_call.1} parent=71 // pred_fallthru
          _
        // Predicated region
        $region77: #{tpu_custom_call.1} parent=71 // pred_check
          %p1749 = pneg %p233
        $region78: #{tpu_custom_call.1} parent=71 // pred_check_branch
          %1751 = sbr.rel (%p1749) target = $region80
        $region79: #{tpu_custom_call.1} parent=71 // pred_region
          %s1752 = sand.u32 %s218, 1
          %s1753 = scalar_lea.sflag [#allocation13], %s1752
          %s1754 = sand.u32 %s218, 1
          %s1755 = smul.addr %s1754, 2
          %s1756 = scalar_lea.vmem [#allocation12], %s1755
          %1757 = dma.done %s1753, 32
        $region80: #{tpu_custom_call.1} parent=71 // pred_fallthru
          _
      $region72: #{tpu_custom_call.1} parent=5 // pred_fallthru
        _
    $region6: #{tpu_custom_call.1} parent=1 // loop_footer
      %s30 = sadd.s32 1, %s26
    $region7: #{tpu_custom_call.1} parent=1 // loop_footer_branch
      %25 = sbr.rel target = $region3
    $region8: #{tpu_custom_call.1} parent=1 // loop_exit
      _
    %1758 = vsyncpa [#allocation3], 1
    %s1759 = scalar_lea.sflag [#allocation3], 1
    %1760 = vsyncpa %s1759, 1
    %1761 = vsyncpa [#allocation6], 1
    %s1762 = scalar_lea.sflag [#allocation6], 1
    %1763 = vsyncpa %s1762, 1
    %1764 = vsyncpa [#allocation9], 1
    %1765 = vsyncpa [#allocation4], 1
    %s1766 = scalar_lea.sflag [#allocation4], 1
    %1767 = vsyncpa %s1766, 1
    %1768 = vsyncpa [#allocation13], 1
    %s1769 = scalar_lea.sflag [#allocation13], 1
    %1770 = vsyncpa %s1769, 1

</llo_original>
